<compile_context>
chip_gen: v6e
topology: v6e:2x2x1
jax: 0.10.0
libtpu: 0.0.40
codegen_flags: <defaults>
</compile_context>

<pallas_src>
import functools
import math

import jax
import jax.numpy as jnp
from jax.experimental import pallas as pl
from jax.experimental.pallas import tpu as pltpu

LANE = 128
ACC_BUDGET_BYTES = 128 * 1024        # ~32 vregs of f32 accumulator
TILE_VMEM_BUDGET = 4 * 1024 * 1024   # per-step (in + out) block budget, pre double-buffer


def _rup(x, m):
    return ((x + m - 1) // m) * m


def _nbytes(shape, dtype):
    return math.prod(shape) * jnp.dtype(dtype).itemsize


# --------------------------- compiler parameters ---------------------------- #

def _vmem_limit(block_bytes):
    phys = 128 * 1024 * 1024
    try:
        phys = int(getattr(pltpu.get_tpu_info(), "vmem_capacity_bytes", phys)) or phys
    except Exception:
        pass
    # headroom for compiler scratch / semaphores: ~52 MiB on v7x, 100 MiB on v5e/v6e
    cap = min(phys - (12 << 20), 100 << 20)
    want = 2 * block_bytes + (16 << 20)
    return int(max(16 << 20, min(cap, want)))


def _compiler_args(block_bytes, flops, bytes_accessed):
    cp = pltpu.CompilerParams(
        dimension_semantics=("parallel", "parallel"),
        vmem_limit_bytes=_vmem_limit(block_bytes))
    cost = pl.CostEstimate(flops=int(flops), transcendentals=0,
                           bytes_accessed=int(bytes_accessed))
    return cp, cost


# ----------------------------- Pallas kernels ------------------------------- #

def _acc_taps(xt_ref, w_ref, *, stride, rows_ph, th, wo):
    """9 accumulated MXU matmuls over row-sliced, per-kw pre-shifted slabs.

    xt_ref: (1, 1, stride^2 * rows_ph, wo + 2//stride, Cin_p) halo'd phase tile
    w_ref : (9, Cin_p, Cout_p)  BN-folded weights, tap-major (kh*3+kw)
    """
    cin = xt_ref.shape[-1]
    cout = w_ref.shape[-1]
    e = 2 // stride
    # <= 3 column-shifted slabs (only dc > 0 cross the 8-sublane tile); each is
    # reused by 3 taps via free leading-dim (row-plane) slices.
    cols = [xt_ref[0, 0, :, dc:dc + wo, :] for dc in range(e + 1)]
    acc = jnp.zeros((th * wo, cout), jnp.float32)
    for kh in range(3):
        for kw in range(3):
            p = (kh % stride) * stride + (kw % stride)   # stride phase
            r0 = p * rows_ph + kh // stride              # static row offset
            win = cols[kw // stride][r0:r0 + th]         # (th, wo, cin)
            acc = acc + jnp.dot(win.reshape(th * wo, cin), w_ref[kh * 3 + kw],
                                preferred_element_type=jnp.float32)
    return acc


def _conv_bn_act_kernel(xt_ref, w_ref, b_ref, o_ref, *, stride, rows_ph, th, wo, relu):
    """y = [relu]( conv3x3_stride(x) + bias ); BN scale pre-folded into w."""
    cout = o_ref.shape[-1]
    y = _acc_taps(xt_ref, w_ref, stride=stride, rows_ph=rows_ph, th=th, wo=wo)
    y = y + b_ref[...]
    if relu:
        y = jnp.maximum(y, 0.0)
    o_ref[0] = y.reshape(th, wo, cout).astype(o_ref.dtype)


def _conv_bn_add_relu_kernel(xt_ref, w_ref, b_ref, r_ref, o_ref, *, rows_ph, th, wo):
    """out = relu( conv3x3_s1(y1) + bias + residual )   (identity shortcut)."""
    cout = o_ref.shape[-1]
    y = _acc_taps(xt_ref, w_ref, stride=1, rows_ph=rows_ph, th=th, wo=wo)
    y = y + b_ref[...] + r_ref[0].reshape(th * wo, cout).astype(jnp.float32)
    o_ref[0] = jnp.maximum(y, 0.0).reshape(th, wo, cout).astype(o_ref.dtype)


def _conv_bn_proj_add_relu_kernel(xt_ref, w_ref, b_ref, xs_ref, ws_ref, bs_ref,
                                  o_ref, *, rows_ph, th, wo):
    """out = relu( conv3x3_s1(y1) + b2 + (xs @ ws + bs) ); 1x1 shortcut fused."""
    cout = o_ref.shape[-1]
    y = _acc_taps(xt_ref, w_ref, stride=1, rows_ph=rows_ph, th=th, wo=wo)
    res = jnp.dot(xs_ref[0].reshape(th * wo, -1), ws_ref[...],
                  preferred_element_type=jnp.float32) + bs_ref[...]
    o_ref[0] = jnp.maximum(y + b_ref[...] + res, 0.0).reshape(th, wo, cout).astype(o_ref.dtype)


# ------------------------------ kernel wrappers ------------------------------ #

def _halo_tiles(x, stride, th, ho, wo, n_tiles):
    """Single gather: pad + stride^2 phase-split + overlapping (halo'd) row tiles.

    Returns (N, n_tiles, stride^2*(th+e), wo+e, C), e = 2//stride, where
    out[n, t, p*(th+e)+r, c, :] = xpad[n, stride*(t*th+r) + p//stride,
                                       stride*c + p%stride, :]."""
    n, h, w, c = x.shape
    e = 2 // stride
    rp, cpw = stride * (ho + e), stride * (wo + e)
    xp = jnp.pad(x, ((0, 0), (1, rp - h - 1), (1, cpw - w - 1), (0, 0)))
    xp = xp.reshape(n, ho + e, stride, wo + e, stride, c)
    xp = xp.transpose(0, 2, 4, 1, 3, 5).reshape(n, stride * stride, ho + e, wo + e, c)
    if n_tiles == 1:
        xt = xp[:, None]                                     # (N,1,s^2,ho+e,wo+e,C)
    else:
        rows = jnp.arange(n_tiles)[:, None] * th + jnp.arange(th + e)[None, :]
        xt = jnp.moveaxis(xp[:, :, rows], 2, 1)              # (N,T,s^2,th+e,wo+e,C)
    return xt.reshape(n, n_tiles, stride * stride * (th + e), wo + e, c)


def _pick_tile_rows(ho, wo, cin_p, cout_p, stride, dtype):
    """Largest divisor of Ho keeping the f32 accumulator within ~32 vregs and
    the per-step blocks small enough to double-buffer in VMEM."""
    itemsize = jnp.dtype(dtype).itemsize
    e = 2 // stride
    best = 1
    for th in range(1, ho + 1):
        if ho % th:
            continue
        acc_bytes = th * wo * cout_p * 4
        in_bytes = stride * stride * (th + e) * (wo + e) * max(cin_p, cout_p) * itemsize
        out_bytes = th * wo * cout_p * itemsize
        if acc_bytes <= ACC_BUDGET_BYTES and in_bytes + out_bytes <= TILE_VMEM_BUDGET:
            best = th
    return best


def conv3x3_bn_act(x, w9, bias, *, stride, relu, th, out_dtype):
    n, h, w, cin_p = x.shape
    cout_p = w9.shape[-1]
    ho, wo = -(-h // stride), -(-w // stride)
    n_tiles = ho // th
    e = 2 // stride
    rows_ph = th + e
    xt = _halo_tiles(x, stride, th, ho, wo, n_tiles)
    xt_blk = (1, 1, stride * stride * rows_ph, wo + e, cin_p)
    out_blk = (1, th, wo, cout_p)
    block_bytes = (_nbytes(xt_blk, xt.dtype) + _nbytes(w9.shape, w9.dtype)
                   + _nbytes(bias.shape, bias.dtype) + _nbytes(out_blk, out_dtype))
    flops = 2 * n * ho * wo * 9 * cin_p * cout_p
    bytes_acc = (sum(a.size * a.dtype.itemsize for a in (xt, w9, bias))
                 + _nbytes((n, ho, wo, cout_p), out_dtype))
    cp, cost = _compiler_args(block_bytes, flops, bytes_acc)
    return pl.pallas_call(
        functools.partial(_conv_bn_act_kernel, stride=stride, rows_ph=rows_ph,
                          th=th, wo=wo, relu=relu),
        out_shape=jax.ShapeDtypeStruct((n, ho, wo, cout_p), out_dtype),
        grid=(n, n_tiles),
        in_specs=[
            pl.BlockSpec(xt_blk, lambda i, t: (i, t, 0, 0, 0)),
            pl.BlockSpec(w9.shape, lambda i, t: (0, 0, 0)),
            pl.BlockSpec(bias.shape, lambda i, t: (0, 0)),
        ],
        out_specs=pl.BlockSpec(out_blk, lambda i, t: (i, t, 0, 0)),
        compiler_params=cp,
        cost_estimate=cost,
    )(xt, w9, bias)


def conv3x3_bn_add_relu(x, w9, bias, res, *, th, out_dtype):
    n, h, w, cmid_p = x.shape
    cout_p = w9.shape[-1]
    ho, wo = h, w
    n_tiles = ho // th
    rows_ph = th + 2
    xt = _halo_tiles(x, 1, th, ho, wo, n_tiles)
    xt_blk = (1, 1, rows_ph, wo + 2, cmid_p)
    out_blk = (1, th, wo, cout_p)
    block_bytes = (_nbytes(xt_blk, xt.dtype) + _nbytes(w9.shape, w9.dtype)
                   + _nbytes(bias.shape, bias.dtype) + _nbytes(out_blk, res.dtype)
                   + _nbytes(out_blk, out_dtype))
    flops = 2 * n * ho * wo * 9 * cmid_p * cout_p
    bytes_acc = (sum(a.size * a.dtype.itemsize for a in (xt, w9, bias, res))
                 + _nbytes((n, ho, wo, cout_p), out_dtype))
    cp, cost = _compiler_args(block_bytes, flops, bytes_acc)
    return pl.pallas_call(
        functools.partial(_conv_bn_add_relu_kernel, rows_ph=rows_ph, th=th, wo=wo),
        out_shape=jax.ShapeDtypeStruct((n, ho, wo, cout_p), out_dtype),
        grid=(n, n_tiles),
        in_specs=[
            pl.BlockSpec(xt_blk, lambda i, t: (i, t, 0, 0, 0)),
            pl.BlockSpec(w9.shape, lambda i, t: (0, 0, 0)),
            pl.BlockSpec(bias.shape, lambda i, t: (0, 0)),
            pl.BlockSpec(out_blk, lambda i, t: (i, t, 0, 0)),
        ],
        out_specs=pl.BlockSpec(out_blk, lambda i, t: (i, t, 0, 0)),
        compiler_params=cp,
        cost_estimate=cost,
    )(xt, w9, bias, res)


def conv3x3_bn_proj_add_relu(x, w9, bias, xs, ws, bs, *, th, out_dtype):
    n, h, w, cmid_p = x.shape
    cin_p, cout_p = ws.shape
    ho, wo = h, w
    n_tiles = ho // th
    rows_ph = th + 2
    xt = _halo_tiles(x, 1, th, ho, wo, n_tiles)
    xt_blk = (1, 1, rows_ph, wo + 2, cmid_p)
    xs_blk = (1, th, wo, cin_p)
    out_blk = (1, th, wo, cout_p)
    block_bytes = (_nbytes(xt_blk, xt.dtype) + _nbytes(w9.shape, w9.dtype)
                   + _nbytes(bias.shape, bias.dtype) + _nbytes(xs_blk, xs.dtype)
                   + _nbytes(ws.shape, ws.dtype) + _nbytes(bs.shape, bs.dtype)
                   + _nbytes(out_blk, out_dtype))
    flops = 2 * n * ho * wo * (9 * cmid_p + cin_p) * cout_p
    bytes_acc = (sum(a.size * a.dtype.itemsize for a in (xt, w9, bias, xs, ws, bs))
                 + _nbytes((n, ho, wo, cout_p), out_dtype))
    cp, cost = _compiler_args(block_bytes, flops, bytes_acc)
    return pl.pallas_call(
        functools.partial(_conv_bn_proj_add_relu_kernel, rows_ph=rows_ph, th=th, wo=wo),
        out_shape=jax.ShapeDtypeStruct((n, ho, wo, cout_p), out_dtype),
        grid=(n, n_tiles),
        in_specs=[
            pl.BlockSpec(xt_blk, lambda i, t: (i, t, 0, 0, 0)),
            pl.BlockSpec(w9.shape, lambda i, t: (0, 0, 0)),
            pl.BlockSpec(bias.shape, lambda i, t: (0, 0)),
            pl.BlockSpec(xs_blk, lambda i, t: (i, t, 0, 0)),
            pl.BlockSpec(ws.shape, lambda i, t: (0, 0)),
            pl.BlockSpec(bs.shape, lambda i, t: (0, 0)),
        ],
        out_specs=pl.BlockSpec(out_blk, lambda i, t: (i, t, 0, 0)),
        compiler_params=cp,
        cost_estimate=cost,
    )(xt, w9, bias, xs, ws, bs)


# -------------------------------- glue (JAX) --------------------------------- #

def _pad_channels(x, cp):
    c = x.shape[-1]
    if c == cp:
        return x
    return jnp.pad(x, ((0, 0),) * (x.ndim - 1) + ((0, cp - c),))


def _bn_fold(gamma, beta, mean, var, eps=1e-5):
    scale = gamma / jnp.sqrt(var + eps)
    return scale, beta - mean * scale


def _fold_weight_3x3(w_oihw, scale, cin_p, cout_p, dtype):
    """(Cout,Cin,3,3) -> (9, Cin_p, Cout_p) with BN scale folded into Cout."""
    cout, cin = w_oihw.shape[:2]
    w = jnp.transpose(w_oihw, (2, 3, 1, 0)).reshape(9, cin, cout)
    w = w * scale[None, None, :]
    return jnp.pad(w, ((0, 0), (0, cin_p - cin), (0, cout_p - cout))).astype(dtype)


def _pad_bias(bias, cout_p):
    return jnp.pad(bias, (0, cout_p - bias.shape[0])).reshape(1, cout_p).astype(jnp.float32)


def residual_block_nhwc(x, params, stride, *, compute_dtype=jnp.bfloat16,
                        tile_rows=None):
    """Residual_Block.forward (eval-mode BN); NHWC, lane-padded channels in/out."""
    n, h, w, cin_p = x.shape
    cout, cin = params["w1"].shape[:2]
    assert cin_p == _rup(cin, LANE)
    cout_p = _rup(cout, LANE)
    ho, wo = -(-h // stride), -(-w // stride)
    th = tile_rows if tile_rows is not None else _pick_tile_rows(
        ho, wo, cin_p, cout_p, stride, compute_dtype)
    assert ho % th == 0, "tile_rows must divide the output height"

    x = x.astype(compute_dtype)

    # --- conv1 (3x3, stride) + BN1 + ReLU (fused Pallas kernel) ---
    s1, b1 = _bn_fold(params["g1"], params["b1"], params["m1"], params["v1"])
    w1 = _fold_weight_3x3(params["w1"], s1, cin_p, cout_p, compute_dtype)
    y1 = conv3x3_bn_act(x, w1, _pad_bias(b1, cout_p), stride=stride, relu=True,
                        th=th, out_dtype=compute_dtype)

    # --- conv2 (3x3, s=1) + BN2 + shortcut + add + ReLU (fused Pallas kernel) ---
    s2, b2 = _bn_fold(params["g2"], params["b2"], params["m2"], params["v2"])
    w2 = _fold_weight_3x3(params["w2"], s2, cout_p, cout_p, compute_dtype)
    b2p = _pad_bias(b2, cout_p)

    if stride != 1 or cin != cout:
        # 1x1 projection shortcut (conv + BN) fused into the second kernel.
        xs = x[:, ::stride, ::stride, :]
        ss, bs = _bn_fold(params["gs"], params["bs"], params["ms"], params["vs"])
        ws = jnp.transpose(params["ws"].reshape(cout, cin)) * ss[None, :]
        ws = jnp.pad(ws, ((0, cin_p - cin), (0, cout_p - cout))).astype(compute_dtype)
        return conv3x3_bn_proj_add_relu(y1, w2, b2p, xs, ws, _pad_bias(bs, cout_p),
                                        th=th, out_dtype=compute_dtype)
    return conv3x3_bn_add_relu(y1, w2, b2p, x, th=th, out_dtype=compute_dtype)


def residual_block(x_nchw, params, stride, *, compute_dtype=jnp.bfloat16,
                   tile_rows=None):
    """NCHW boundary wrapper; in a chain keep residual_block_nhwc outputs instead."""
    x = jnp.transpose(x_nchw, (0, 2, 3, 1))                  # NCHW -> NHWC
    cin = x.shape[-1]
    cout = params["w1"].shape[0]
    x = _pad_channels(x, _rup(cin, LANE))
    out = residual_block_nhwc(x, params, stride, compute_dtype=compute_dtype,
                              tile_rows=tile_rows)
    return jnp.transpose(out[..., :cout], (0, 3, 1, 2))      # NHWC -> NCHW


# ------------------------ pure-JAX reference (check) ------------------------- #

def _ref_block(x, params, stride):
    def conv(x, w, s, p):
        return jax.lax.conv_general_dilated(
            x, w, (s, s), [(p, p), (p, p)],
            dimension_numbers=("NCHW", "OIHW", "NCHW"))

    def bn(x, g, b, m, v, eps=1e-5):
        g, b, m, v = (t[None, :, None, None] for t in (g, b, m, v))
        return g * (x - m) / jnp.sqrt(v + eps) + b

    y = conv(x, params["w1"], stride, 1)
    y = jax.nn.relu(bn(y, params["g1"], params["b1"], params["m1"], params["v1"]))
    y = bn(conv(y, params["w2"], 1, 1),
           params["g2"], params["b2"], params["m2"], params["v2"])
    r = x
    if "ws" in params:
        r = bn(conv(x, params["ws"], stride, 0),
               params["gs"], params["bs"], params["ms"], params["vs"])
    return jax.nn.relu(y + r)


# ----------------------------------- main ------------------------------------ #

if __name__ == "__main__":
    # Residual_Block(input_shape=4, output_shape=8, stride=2) -> projection shortcut.
    N, Cin, H, W = 2, 4, 16, 16
    Cout, stride = 8, 2

    key = jax.random.PRNGKey(0)
    ks = jax.random.split(key, 20)

    def bn_params(k0, k1, k2, k3, c):
        return (jax.random.normal(k0, (c,), jnp.float32) * 0.1 + 1.0,   # gamma
                jax.random.normal(k1, (c,), jnp.float32) * 0.1,         # beta
                jax.random.normal(k2, (c,), jnp.float32) * 0.1,         # running_mean
                jax.random.uniform(k3, (c,), jnp.float32, 0.5, 1.5))    # running_var

    g1, b1, m1, v1 = bn_params(ks[1], ks[2], ks[3], ks[4], Cout)
    g2, b2, m2, v2 = bn_params(ks[6], ks[7], ks[8], ks[9], Cout)
    gs, bs, ms, vs = bn_params(ks[11], ks[12], ks[13], ks[14], Cout)

    params = {
        "w1": jax.random.normal(ks[0], (Cout, Cin, 3, 3), jnp.float32) * 0.1,
        "g1": g1, "b1": b1, "m1": m1, "v1": v1,
        "w2": jax.random.normal(ks[5], (Cout, Cout, 3, 3), jnp.float32) * 0.1,
        "g2": g2, "b2": b2, "m2": m2, "v2": v2,
        "ws": jax.random.normal(ks[10], (Cout, Cin, 1, 1), jnp.float32) * 0.1,
        "gs": gs, "bs": bs, "ms": ms, "vs": vs,
    }
    x = jax.random.normal(ks[15], (N, Cin, H, W), jnp.float32)

    ref = jax.block_until_ready(_ref_block(x, params, stride))

    # f32 operands (single tile): tight check.
    out = jax.block_until_ready(
        residual_block(x, params, stride, compute_dtype=jnp.float32))
    assert out.shape == ref.shape == (N, Cout, H // stride, W // stride)
    assert jnp.allclose(out, ref, rtol=1e-4, atol=1e-4), "f32 mismatch vs reference"

    # Forced multi-tile run (2 row tiles) exercises the stride-2 halo-gather path.
    out_t = jax.block_until_ready(
        residual_block(x, params, stride, compute_dtype=jnp.float32, tile_rows=4))
    assert jnp.allclose(out_t, ref, rtol=1e-4, atol=1e-4), "stride-2 tiled mismatch"

    # Default path: bf16 operands + f32 accumulation (v5e/v6e/v7x MXU): loose tol.
    out_bf16 = jax.block_until_ready(residual_block(x, params, stride))
    assert jnp.allclose(out_bf16.astype(jnp.float32), ref, rtol=1e-1, atol=1e-1), \
        "bf16 mismatch vs reference"

    # Residual_Block(8, 8, stride=1) -> identity-shortcut kernel path.
    Ci2 = 8
    params_id = {
        "w1": jax.random.normal(ks[16], (Ci2, Ci2, 3, 3), jnp.float32) * 0.1,
        "g1": g1, "b1": b1, "m1": m1, "v1": v1,
        "w2": jax.random.normal(ks[17], (Ci2, Ci2, 3, 3), jnp.float32) * 0.1,
        "g2": g2, "b2": b2, "m2": m2, "v2": v2,
    }
    x2 = jax.random.normal(ks[18], (N, Ci2, H, W), jnp.float32)
    ref2 = jax.block_until_ready(_ref_block(x2, params_id, 1))

    out2 = jax.block_until_ready(
        residual_block(x2, params_id, 1, compute_dtype=jnp.float32))
    assert out2.shape == ref2.shape == (N, Ci2, H, W)
    assert jnp.allclose(out2, ref2, rtol=1e-4, atol=1e-4), "identity-path mismatch"

    # Forced multi-tile run (4 row tiles) exercises the stride-1 halo-gather path.
    out2_t = jax.block_until_ready(
        residual_block(x2, params_id, 1, compute_dtype=jnp.float32, tile_rows=4))
    assert jnp.allclose(out2_t, ref2, rtol=1e-4, atol=1e-4), "stride-1 tiled mismatch"

    print("KERNEL_OK")
</pallas_src>

<mosaic_0001>
module attributes {stable_mosaic.version = 11 : i64} {
  func.func @_conv_bn_act_kernel(%arg0: i32, %arg1: i32, %arg2: memref<1x1x36x9x128xf32, #tpu.memory_space<vmem>>, %arg3: memref<9x128x128xf32, #tpu.memory_space<vmem>>, %arg4: memref<1x128xf32, #tpu.memory_space<vmem>>, %arg5: memref<1x8x8x128xf32, #tpu.memory_space<vmem>>) attributes {dimension_semantics = [#tpu.dimension_semantics<parallel>, #tpu.dimension_semantics<parallel>], iteration_bounds = array<i64: 2, 1>, scalar_prefetch = 0 : i64, scratch_operands = 0 : i64, tpu.core_type = #tpu.core_type<tc>, window_params = [{transform_indices = @transform_0, window_bounds = array<i64: 1, 1, 36, 9, 128>}, {pipeline_mode = #tpu.pipeline_mode<synchronous>, transform_indices = @transform_1, window_bounds = array<i64: 9, 128, 128>}, {pipeline_mode = #tpu.pipeline_mode<synchronous>, transform_indices = @transform_2, window_bounds = array<i64: 1, 128>}, {transform_indices = @transform_3, window_bounds = array<i64: 1, 8, 8, 128>}]} {
    %c0 = arith.constant 0 : index
    %c0_0 = arith.constant 0 : index
    %c0_1 = arith.constant 0 : index
    %c0_2 = arith.constant 0 : index
    %c0_3 = arith.constant 0 : index
    %0 = vector.load %arg2[%c0, %c0_0, %c0_1, %c0_2, %c0_3] : memref<1x1x36x9x128xf32, #tpu.memory_space<vmem>>, vector<1x1x36x8x128xf32>
    %1 = vector.shape_cast %0 : vector<1x1x36x8x128xf32> to vector<36x8x128xf32>
    %c0_4 = arith.constant 0 : index
    %c0_5 = arith.constant 0 : index
    %c0_6 = arith.constant 0 : index
    %c1 = arith.constant 1 : index
    %c0_7 = arith.constant 0 : index
    %2 = vector.load %arg2[%c0_4, %c0_5, %c0_6, %c1, %c0_7] : memref<1x1x36x9x128xf32, #tpu.memory_space<vmem>>, vector<1x1x36x8x128xf32>
    %3 = vector.shape_cast %2 : vector<1x1x36x8x128xf32> to vector<36x8x128xf32>
    %cst = arith.constant 0.000000e+00 : f32
    %4 = vector.broadcast %cst : f32 to vector<64x128xf32>
    %5 = vector.extract_strided_slice %1 {offsets = [0, 0, 0], sizes = [8, 8, 128], strides = [1, 1, 1]} : vector<36x8x128xf32> to vector<8x8x128xf32>
    %6 = vector.shape_cast %5 : vector<8x8x128xf32> to vector<64x128xf32>
    %c0_8 = arith.constant 0 : index
    %c0_9 = arith.constant 0 : index
    %c0_10 = arith.constant 0 : index
    %7 = vector.load %arg3[%c0_8, %c0_9, %c0_10] : memref<9x128x128xf32, #tpu.memory_space<vmem>>, vector<1x128x128xf32>
    %8 = vector.shape_cast %7 : vector<1x128x128xf32> to vector<128x128xf32>
    %cst_11 = arith.constant dense<0.000000e+00> : vector<64x128xf32>
    %9 = tpu.matmul %6, %8, %cst_11 {dimension_numbers = #tpu.dot_dimension_numbers<[1], [0], [0], [1], [0, 0, 1, 1], [], []>} : vector<64x128xf32>, vector<128x128xf32>, vector<64x128xf32> -> vector<64x128xf32>
    %10 = arith.addf %4, %9 : vector<64x128xf32>
    %11 = vector.extract_strided_slice %1 {offsets = [9, 0, 0], sizes = [8, 8, 128], strides = [1, 1, 1]} : vector<36x8x128xf32> to vector<8x8x128xf32>
    %12 = vector.shape_cast %11 : vector<8x8x128xf32> to vector<64x128xf32>
    %c1_12 = arith.constant 1 : index
    %c0_13 = arith.constant 0 : index
    %c0_14 = arith.constant 0 : index
    %13 = vector.load %arg3[%c1_12, %c0_13, %c0_14] : memref<9x128x128xf32, #tpu.memory_space<vmem>>, vector<1x128x128xf32>
    %14 = vector.shape_cast %13 : vector<1x128x128xf32> to vector<128x128xf32>
    %cst_15 = arith.constant dense<0.000000e+00> : vector<64x128xf32>
    %15 = tpu.matmul %12, %14, %cst_15 {dimension_numbers = #tpu.dot_dimension_numbers<[1], [0], [0], [1], [0, 0, 1, 1], [], []>} : vector<64x128xf32>, vector<128x128xf32>, vector<64x128xf32> -> vector<64x128xf32>
    %16 = arith.addf %10, %15 : vector<64x128xf32>
    %17 = vector.extract_strided_slice %3 {offsets = [0, 0, 0], sizes = [8, 8, 128], strides = [1, 1, 1]} : vector<36x8x128xf32> to vector<8x8x128xf32>
    %18 = vector.shape_cast %17 : vector<8x8x128xf32> to vector<64x128xf32>
    %c2 = arith.constant 2 : index
    %c0_16 = arith.constant 0 : index
    %c0_17 = arith.constant 0 : index
    %19 = vector.load %arg3[%c2, %c0_16, %c0_17] : memref<9x128x128xf32, #tpu.memory_space<vmem>>, vector<1x128x128xf32>
    %20 = vector.shape_cast %19 : vector<1x128x128xf32> to vector<128x128xf32>
    %cst_18 = arith.constant dense<0.000000e+00> : vector<64x128xf32>
    %21 = tpu.matmul %18, %20, %cst_18 {dimension_numbers = #tpu.dot_dimension_numbers<[1], [0], [0], [1], [0, 0, 1, 1], [], []>} : vector<64x128xf32>, vector<128x128xf32>, vector<64x128xf32> -> vector<64x128xf32>
    %22 = arith.addf %16, %21 : vector<64x128xf32>
    %23 = vector.extract_strided_slice %1 {offsets = [18, 0, 0], sizes = [8, 8, 128], strides = [1, 1, 1]} : vector<36x8x128xf32> to vector<8x8x128xf32>
    %24 = vector.shape_cast %23 : vector<8x8x128xf32> to vector<64x128xf32>
    %c3 = arith.constant 3 : index
    %c0_19 = arith.constant 0 : index
    %c0_20 = arith.constant 0 : index
    %25 = vector.load %arg3[%c3, %c0_19, %c0_20] : memref<9x128x128xf32, #tpu.memory_space<vmem>>, vector<1x128x128xf32>
    %26 = vector.shape_cast %25 : vector<1x128x128xf32> to vector<128x128xf32>
    %cst_21 = arith.constant dense<0.000000e+00> : vector<64x128xf32>
    %27 = tpu.matmul %24, %26, %cst_21 {dimension_numbers = #tpu.dot_dimension_numbers<[1], [0], [0], [1], [0, 0, 1, 1], [], []>} : vector<64x128xf32>, vector<128x128xf32>, vector<64x128xf32> -> vector<64x128xf32>
    %28 = arith.addf %22, %27 : vector<64x128xf32>
    %29 = vector.extract_strided_slice %1 {offsets = [27, 0, 0], sizes = [8, 8, 128], strides = [1, 1, 1]} : vector<36x8x128xf32> to vector<8x8x128xf32>
    %30 = vector.shape_cast %29 : vector<8x8x128xf32> to vector<64x128xf32>
    %c4 = arith.constant 4 : index
    %c0_22 = arith.constant 0 : index
    %c0_23 = arith.constant 0 : index
    %31 = vector.load %arg3[%c4, %c0_22, %c0_23] : memref<9x128x128xf32, #tpu.memory_space<vmem>>, vector<1x128x128xf32>
    %32 = vector.shape_cast %31 : vector<1x128x128xf32> to vector<128x128xf32>
    %cst_24 = arith.constant dense<0.000000e+00> : vector<64x128xf32>
    %33 = tpu.matmul %30, %32, %cst_24 {dimension_numbers = #tpu.dot_dimension_numbers<[1], [0], [0], [1], [0, 0, 1, 1], [], []>} : vector<64x128xf32>, vector<128x128xf32>, vector<64x128xf32> -> vector<64x128xf32>
    %34 = arith.addf %28, %33 : vector<64x128xf32>
    %35 = vector.extract_strided_slice %3 {offsets = [18, 0, 0], sizes = [8, 8, 128], strides = [1, 1, 1]} : vector<36x8x128xf32> to vector<8x8x128xf32>
    %36 = vector.shape_cast %35 : vector<8x8x128xf32> to vector<64x128xf32>
    %c5 = arith.constant 5 : index
    %c0_25 = arith.constant 0 : index
    %c0_26 = arith.constant 0 : index
    %37 = vector.load %arg3[%c5, %c0_25, %c0_26] : memref<9x128x128xf32, #tpu.memory_space<vmem>>, vector<1x128x128xf32>
    %38 = vector.shape_cast %37 : vector<1x128x128xf32> to vector<128x128xf32>
    %cst_27 = arith.constant dense<0.000000e+00> : vector<64x128xf32>
    %39 = tpu.matmul %36, %38, %cst_27 {dimension_numbers = #tpu.dot_dimension_numbers<[1], [0], [0], [1], [0, 0, 1, 1], [], []>} : vector<64x128xf32>, vector<128x128xf32>, vector<64x128xf32> -> vector<64x128xf32>
    %40 = arith.addf %34, %39 : vector<64x128xf32>
    %41 = vector.extract_strided_slice %1 {offsets = [1, 0, 0], sizes = [8, 8, 128], strides = [1, 1, 1]} : vector<36x8x128xf32> to vector<8x8x128xf32>
    %42 = vector.shape_cast %41 : vector<8x8x128xf32> to vector<64x128xf32>
    %c6 = arith.constant 6 : index
    %c0_28 = arith.constant 0 : index
    %c0_29 = arith.constant 0 : index
    %43 = vector.load %arg3[%c6, %c0_28, %c0_29] : memref<9x128x128xf32, #tpu.memory_space<vmem>>, vector<1x128x128xf32>
    %44 = vector.shape_cast %43 : vector<1x128x128xf32> to vector<128x128xf32>
    %cst_30 = arith.constant dense<0.000000e+00> : vector<64x128xf32>
    %45 = tpu.matmul %42, %44, %cst_30 {dimension_numbers = #tpu.dot_dimension_numbers<[1], [0], [0], [1], [0, 0, 1, 1], [], []>} : vector<64x128xf32>, vector<128x128xf32>, vector<64x128xf32> -> vector<64x128xf32>
    %46 = arith.addf %40, %45 : vector<64x128xf32>
    %47 = vector.extract_strided_slice %1 {offsets = [10, 0, 0], sizes = [8, 8, 128], strides = [1, 1, 1]} : vector<36x8x128xf32> to vector<8x8x128xf32>
    %48 = vector.shape_cast %47 : vector<8x8x128xf32> to vector<64x128xf32>
    %c7 = arith.constant 7 : index
    %c0_31 = arith.constant 0 : index
    %c0_32 = arith.constant 0 : index
    %49 = vector.load %arg3[%c7, %c0_31, %c0_32] : memref<9x128x128xf32, #tpu.memory_space<vmem>>, vector<1x128x128xf32>
    %50 = vector.shape_cast %49 : vector<1x128x128xf32> to vector<128x128xf32>
    %cst_33 = arith.constant dense<0.000000e+00> : vector<64x128xf32>
    %51 = tpu.matmul %48, %50, %cst_33 {dimension_numbers = #tpu.dot_dimension_numbers<[1], [0], [0], [1], [0, 0, 1, 1], [], []>} : vector<64x128xf32>, vector<128x128xf32>, vector<64x128xf32> -> vector<64x128xf32>
    %52 = arith.addf %46, %51 : vector<64x128xf32>
    %53 = vector.extract_strided_slice %3 {offsets = [1, 0, 0], sizes = [8, 8, 128], strides = [1, 1, 1]} : vector<36x8x128xf32> to vector<8x8x128xf32>
    %54 = vector.shape_cast %53 : vector<8x8x128xf32> to vector<64x128xf32>
    %c8 = arith.constant 8 : index
    %c0_34 = arith.constant 0 : index
    %c0_35 = arith.constant 0 : index
    %55 = vector.load %arg3[%c8, %c0_34, %c0_35] : memref<9x128x128xf32, #tpu.memory_space<vmem>>, vector<1x128x128xf32>
    %56 = vector.shape_cast %55 : vector<1x128x128xf32> to vector<128x128xf32>
    %cst_36 = arith.constant dense<0.000000e+00> : vector<64x128xf32>
    %57 = tpu.matmul %54, %56, %cst_36 {dimension_numbers = #tpu.dot_dimension_numbers<[1], [0], [0], [1], [0, 0, 1, 1], [], []>} : vector<64x128xf32>, vector<128x128xf32>, vector<64x128xf32> -> vector<64x128xf32>
    %58 = arith.addf %52, %57 : vector<64x128xf32>
    %c0_37 = arith.constant 0 : index
    %c0_38 = arith.constant 0 : index
    %59 = vector.load %arg4[%c0_37, %c0_38] : memref<1x128xf32, #tpu.memory_space<vmem>>, vector<1x128xf32>
    %60 = vector.broadcast %59 : vector<1x128xf32> to vector<64x128xf32>
    %61 = arith.addf %58, %60 : vector<64x128xf32>
    %cst_39 = arith.constant 0.000000e+00 : f32
    %62 = vector.broadcast %cst_39 : f32 to vector<64x128xf32>
    %63 = arith.maximumf %61, %62 : vector<64x128xf32>
    %64 = vector.shape_cast %63 : vector<64x128xf32> to vector<8x8x128xf32>
    %c0_40 = arith.constant 0 : index
    %c0_41 = arith.constant 0 : index
    %c0_42 = arith.constant 0 : index
    %c0_43 = arith.constant 0 : index
    %65 = vector.load %arg5[%c0_40, %c0_41, %c0_42, %c0_43] : memref<1x8x8x128xf32, #tpu.memory_space<vmem>>, vector<1x8x8x128xf32>
    %66 = vector.shape_cast %65 : vector<1x8x8x128xf32> to vector<8x8x128xf32>
    %67 = vector.shape_cast %64 : vector<8x8x128xf32> to vector<1x8x8x128xf32>
    tpu.vector_store %arg5[%c0_40, %c0_41, %c0_42, %c0_43], %67 {strides = array<i32>} : memref<1x8x8x128xf32, #tpu.memory_space<vmem>>, vector<1x8x8x128xf32>,
    return
  }
  func.func @transform_0(%arg0: i32, %arg1: i32) -> (i32, i32, i32, i32, i32) {
    %c0_i32 = arith.constant 0 : i32
    %c0_i32_0 = arith.constant 0 : i32
    %c0_i32_1 = arith.constant 0 : i32
    %c0_i32_2 = arith.constant 0 : i32
    return %arg0, %arg1, %c0_i32, %c0_i32_0, %c0_i32_1 : i32, i32, i32, i32, i32
  }
  func.func @transform_1(%arg0: i32, %arg1: i32) -> (i32, i32, i32) {
    %c0_i32 = arith.constant 0 : i32
    %c0_i32_0 = arith.constant 0 : i32
    %c0_i32_1 = arith.constant 0 : i32
    %c0_i32_2 = arith.constant 0 : i32
    return %c0_i32, %c0_i32_0, %c0_i32_1 : i32, i32, i32
  }
  func.func @transform_2(%arg0: i32, %arg1: i32) -> (i32, i32) {
    %c0_i32 = arith.constant 0 : i32
    %c0_i32_0 = arith.constant 0 : i32
    %c0_i32_1 = arith.constant 0 : i32
    return %c0_i32, %c0_i32_0 : i32, i32
  }
  func.func @transform_3(%arg0: i32, %arg1: i32) -> (i32, i32, i32, i32) {
    %c0_i32 = arith.constant 0 : i32
    %c0_i32_0 = arith.constant 0 : i32
    %c0_i32_1 = arith.constant 0 : i32
    return %arg0, %arg1, %c0_i32, %c0_i32_0 : i32, i32, i32, i32
  }
}

</mosaic_0001>

<llo_original>
// kernel: tpu_custom_call.1
$region0: #{tpu_custom_call.1}
  #allocation0 [shape = 'u32[]', space=smem, size = 0x4, offset = 0x4, fixed_abs, tag = 'smem constant byte address 0x4 - core index']
  #allocation1 [shape = 'u32[144,128]{1,0:T(1,128)}', space=vmem, size = 0x12000, scoped, tag = 'internal scratch']
  %s0 = inlined_call_operand.vmem [shape: f32[2,1,36,9,128], index: 0, kind: input, shape index: {}]
  %s1 = inlined_call_operand.vmem [shape: f32[9,128,128], index: 1, kind: input, shape index: {}]
  %s2 = inlined_call_operand.vmem [shape: f32[1,128], index: 2, kind: input, shape index: {}]
  %s3 = inlined_call_operand.hbm [shape: f32[2,8,8,128], index: 3, kind: output, shape index: {}]
  %s4 = sld [smem:[#allocation0]]
  $region45: #{tpu_custom_call.1} parent=0
    _
  %s6 = ssub.s32 1, %s4
  %s7 = scalar_select 0, %s6, %s4
  $region1: #{tpu_custom_call.1} parent=0
    #allocation2 [shape = 'u8[65536]{0}', space=vmem, size = 0x10000, scoped, tag = 'output window, operand 0']
    #allocation3 [shape = 's32[2]{0}', space=sflag, size = 0x8, scoped, tag = 'scoped memory for tpu_custom_call.1']
    %8 = vsyncpa [#allocation3], 0
    %s9 = scalar_lea.sflag [#allocation3], 1
    %10 = vsyncpa %s9, 0
    loop: start=0, step=1, limit=4
    $region2: #{tpu_custom_call.1} parent=1 // loop_pre_header
      _
    $region3: #{tpu_custom_call.1} parent=1 // loop_header
      %s12 = sphi 0, %s16
      %p13 = scmp.ge.s32.totalorder %s12, 4
      %s19 = sphi 0, %s31
      %s20 = sphi 0, %s27
      %s21 = sphi 0, %s19
      %s22 = sphi 0, %s20
      %s23 = sphi 0, %s21
      %s24 = sphi 0, %s22
      %s36 = sphi 0, %s38
      %s39 = sphi 0, %s36
      %s40 = sphi 0, %s39
      %s56 = sphi 0, %s40
      %s60 = sphi 0, %s60
      %s62 = sphi 0, %s60
      %s63 = sphi 0, %s62
      %s77 = sphi 0, %s63
      %s81 = sphi 0, %s81
      %s83 = sphi 0, %s81
      %s84 = sphi 0, %s83
      %s98 = sphi 0, %s84
      %s106 = sphi 0, %s108
      %s109 = sphi 0, %s106
      %s110 = sphi 0, %s109
      %s126 = sphi 0, %s110
    $region4: #{tpu_custom_call.1} parent=1 // loop_header_branch
      %15 = sbr.rel (%p13) target = $region8
    $region5: #{tpu_custom_call.1} parent=1 // loop_body
      %s17 = ssub.s32 %s12, 1
      %s18 = ssub.s32 %s12, 2
      %s25 = sadd.s32 1, %s20
      %p26 = scmp.ge.s32.totalorder %s25, 1
      %s27 = scalar_select %p26, 0, %s25
      %s28 = sadd.s32 1, %s19
      %s29 = scalar_select %p26, %s28, %s19
      %p30 = scmp.ge.s32.totalorder %s29, 2
      %s31 = scalar_select %p30, 0, %s29
      %s32 = ssub.s32 %s19, %s31
      %s33 = ssub.s32 %s20, %s27
      %s34 = sor.u32 %s32, %s33
      %p35 = scmp.eq.s32.totalorder %s34, 0
      %s37 = sadd.s32 %s36, 1
      %s38 = scalar_select %p35, %s36, %s37
      %p41 = pneg %p35
      %p42 = scmp.eq.s32.totalorder %s12, 1
      %p43 = por %p41, %p42
      %p44 = scmp.ne.s32.totalorder %s36, %s39
      %p45 = scmp.eq.s32.totalorder %s12, 0
      %p46 = por %p44, %p45
      %p47 = scmp.ne.s32.totalorder %s36, %s39
      %p48 = scmp.eq.s32.totalorder %s17, 1
      %p49 = por %p47, %p48
      %p50 = scmp.ne.s32.totalorder %s39, %s40
      %p51 = scmp.eq.s32.totalorder %s17, 0
      %p52 = por %p50, %p51
      %p53 = scmp.ne.s32.totalorder %s39, %s40
      %p54 = scmp.eq.s32.totalorder %s18, 1
      %p55 = por %p53, %p54
      %p57 = scmp.ne.s32.totalorder %s40, %s56
      %p58 = scmp.eq.s32.totalorder %s18, 0
      %p59 = por %p57, %p58
      %s61 = sadd.s32 %s60, 1
      %p64 = scmp.eq.s32.totalorder %s12, 1
      %p65 = scmp.ne.s32.totalorder %s60, %s62
      %p66 = scmp.eq.s32.totalorder %s12, 0
      %p67 = por %p65, %p66
      %p68 = scmp.ne.s32.totalorder %s60, %s62
      %p69 = scmp.eq.s32.totalorder %s17, 1
      %p70 = por %p68, %p69
      %p71 = scmp.ne.s32.totalorder %s62, %s63
      %p72 = scmp.eq.s32.totalorder %s17, 0
      %p73 = por %p71, %p72
      %p74 = scmp.ne.s32.totalorder %s62, %s63
      %p75 = scmp.eq.s32.totalorder %s18, 1
      %p76 = por %p74, %p75
      %p78 = scmp.ne.s32.totalorder %s63, %s77
      %p79 = scmp.eq.s32.totalorder %s18, 0
      %p80 = por %p78, %p79
      %s82 = sadd.s32 %s81, 1
      %p85 = scmp.eq.s32.totalorder %s12, 1
      %p86 = scmp.ne.s32.totalorder %s81, %s83
      %p87 = scmp.eq.s32.totalorder %s12, 0
      %p88 = por %p86, %p87
      %p89 = scmp.ne.s32.totalorder %s81, %s83
      %p90 = scmp.eq.s32.totalorder %s17, 1
      %p91 = por %p89, %p90
      %p92 = scmp.ne.s32.totalorder %s83, %s84
      %p93 = scmp.eq.s32.totalorder %s17, 0
      %p94 = por %p92, %p93
      %p95 = scmp.ne.s32.totalorder %s83, %s84
      %p96 = scmp.eq.s32.totalorder %s18, 1
      %p97 = por %p95, %p96
      %p99 = scmp.ne.s32.totalorder %s84, %s98
      %p100 = scmp.eq.s32.totalorder %s18, 0
      %p101 = por %p99, %p100
      %s102 = ssub.s32 %s19, %s31
      %s103 = ssub.s32 %s20, %s27
      %s104 = sor.u32 %s102, %s103
      %p105 = scmp.eq.s32.totalorder %s104, 0
      %s107 = sadd.s32 %s106, 1
      %s108 = scalar_select %p105, %s106, %s107
      %p111 = pneg %p105
      %p112 = scmp.eq.s32.totalorder %s12, 1
      %p113 = por %p111, %p112
      %p114 = scmp.ne.s32.totalorder %s106, %s109
      %p115 = scmp.eq.s32.totalorder %s12, 0
      %p116 = por %p114, %p115
      %p117 = scmp.ne.s32.totalorder %s106, %s109
      %p118 = scmp.eq.s32.totalorder %s17, 1
      %p119 = por %p117, %p118
      %p120 = scmp.ne.s32.totalorder %s109, %s110
      %p121 = scmp.eq.s32.totalorder %s17, 0
      %p122 = por %p120, %p121
      %p123 = scmp.ne.s32.totalorder %s109, %s110
      %p124 = scmp.eq.s32.totalorder %s18, 1
      %p125 = por %p123, %p124
      %p127 = scmp.ne.s32.totalorder %s110, %s126
      %p128 = scmp.eq.s32.totalorder %s18, 0
      %p129 = por %p127, %p128
      %p130 = scmp.le.s32.totalorder 1, %s12
      %p131 = scmp.lt.s32.totalorder %s12, 3
      %p132 = pnand %p130, %p131
      %p133 = pneg %p132
      // Predicated region
      $region9: #{tpu_custom_call.1} parent=5 // pred_check
        _
      $region10: #{tpu_custom_call.1} parent=5 // pred_check_branch
        %135 = sbr.rel (%p132) target = $region12
      $region11: #{tpu_custom_call.1} parent=5 // pred_region
        %s136 = ssub.s32 %s12, 1
        // Predicated region
        $region13: #{tpu_custom_call.1} parent=11 // pred_check
          %p137 = pneg %p73
        $region14: #{tpu_custom_call.1} parent=11 // pred_check_branch
          %139 = sbr.rel (%p137) target = $region16
        $region15: #{tpu_custom_call.1} parent=11 // pred_region
          _
        $region16: #{tpu_custom_call.1} parent=11 // pred_fallthru
          _
        // Predicated region
        $region17: #{tpu_custom_call.1} parent=11 // pred_check
          %p140 = pneg %p94
        $region18: #{tpu_custom_call.1} parent=11 // pred_check_branch
          %142 = sbr.rel (%p140) target = $region20
        $region19: #{tpu_custom_call.1} parent=11 // pred_region
          _
        $region20: #{tpu_custom_call.1} parent=11 // pred_fallthru
          _
      $region12: #{tpu_custom_call.1} parent=5 // pred_fallthru
        _
      %p143 = scmp.lt.s32.totalorder %s12, 2
      // Predicated region
      $region21: #{tpu_custom_call.1} parent=5 // pred_check
        %p144 = pneg %p143
      $region22: #{tpu_custom_call.1} parent=5 // pred_check_branch
        %146 = sbr.rel (%p144) target = $region24
      $region23: #{tpu_custom_call.1} parent=5 // pred_region
        // Predicated region
        $region25: #{tpu_custom_call.1} parent=23 // pred_check
          %p147 = pneg %p46
        $region26: #{tpu_custom_call.1} parent=23 // pred_check_branch
          %149 = sbr.rel (%p147) target = $region28
        $region27: #{tpu_custom_call.1} parent=23 // pred_region
          %p150 = scmp.lt.s32.totalorder %s19, 1
          %s151 = scalar_select %p150, %s19, 1
          %p152 = scmp.lt.s32.totalorder %s20, 0
          %s153 = scalar_select %p152, %s20, 0
          %s154 = smul.addr %s153, 72
          %s155 = smul.addr %s151, 72
          %s156 = sadd.s32 %s154, %s155
          %s157 = smul.addr %s156, 8
          %s158 = scalar_lea.vmem %s0, %s157
        $region28: #{tpu_custom_call.1} parent=23 // pred_fallthru
          _
      $region24: #{tpu_custom_call.1} parent=5 // pred_fallthru
        _
      %p159 = scmp.le.s32.totalorder 1, %s12
      %p160 = scmp.lt.s32.totalorder %s12, 3
      %p161 = pnand %p159, %p160
      %p162 = pneg %p161
      // Predicated region
      $region29: #{tpu_custom_call.1} parent=5 // pred_check
        _
      $region30: #{tpu_custom_call.1} parent=5 // pred_check_branch
        %164 = sbr.rel (%p161) target = $region32
      $region31: #{tpu_custom_call.1} parent=5 // pred_region
        %s165 = ssub.s32 %s12, 1
        %p166 = scmp.lt.s32.totalorder %s21, 1
        %s167 = scalar_select %p166, %s21, 1
        %p168 = scmp.lt.s32.totalorder %s22, 0
        %s169 = scalar_select %p168, %s22, 0
        %s170 = smul.addr %s169, 72
        %s171 = smul.addr %s167, 72
        %s172 = sadd.s32 %s170, %s171
        %s173 = smul.addr %s172, 8
        %s174 = scalar_lea.vmem %s0, %s173
        %p175 = pneg %p52
        %p176 = pneg %p49
        %p177 = pneg %p73
        %p178 = pneg %p70
        %p179 = pneg %p94
        %p180 = pneg %p91
        %p181 = pneg %p122
        %p182 = pneg %p119
        %s183 = sand.u32 %s109, 1
        %s184 = scalar_lea.sflag [#allocation3], %s183
        %s185 = sand.u32 %s109, 1
        %s186 = smul.addr %s185, 64
        %s187 = scalar_lea.vmem [#allocation2], %s186
        %p188 = scmp.lt.s32.totalorder %s21, 1
        %s189 = scalar_select %p188, %s21, 1
        %p190 = scmp.lt.s32.totalorder %s22, 0
        %s191 = scalar_select %p190, %s22, 0
        %s192 = smul.addr %s191, 72
        %s193 = smul.addr %s189, 72
        %s194 = sadd.s32 %s192, %s193
        %s195 = smul.addr %s194, 8
        %s196 = scalar_lea.vmem %s0, %s195
        %s197 = smul.u32 8, %s22
        %v198 = vld [vmem:[%s196] sm:$0xff]
        %v199 = vld [vmem:[%s196 + $0x10] sm:$0xff]
        %v200 = vld [vmem:[%s196 + $0x20] sm:$0xff]
        %v201 = vld [vmem:[%s196 + $0x30] sm:$0xff]
        %v202 = vld [vmem:[%s196 + $0x40] sm:$0xff]
        %v203 = vld [vmem:[%s196 + $0x50] sm:$0xff]
        %v204 = vld [vmem:[%s196 + $0x60] sm:$0xff]
        %v205 = vld [vmem:[%s196 + $0x70] sm:$0xff]
        %v206 = vld [vmem:[%s196 + $0x80] sm:$0xff]
        %v207 = vld [vmem:[%s196 + $0x90] sm:$0xff]
        %v208 = vld [vmem:[%s196 + $0xa0] sm:$0xff]
        %v209 = vld [vmem:[%s196 + $0xb0] sm:$0xff]
        %v210 = vld [vmem:[%s196 + $0xc0] sm:$0xff]
        %v211 = vld [vmem:[%s196 + $0xd0] sm:$0xff]
        %v212 = vld [vmem:[%s196 + $0xe0] sm:$0xff]
        %v213 = vld [vmem:[%s196 + $0xf0] sm:$0xff]
        %v214 = vld [vmem:[%s196 + $0x100] sm:$0xff]
        %v215 = vld [vmem:[%s196 + $0x110] sm:$0xff]
        %v216 = vld [vmem:[%s196 + $0x120] sm:$0xff]
        %v217 = vld [vmem:[%s196 + $0x130] sm:$0xff]
        %v218 = vld [vmem:[%s196 + $0x140] sm:$0xff]
        %v219 = vld [vmem:[%s196 + $0x150] sm:$0xff]
        %v220 = vld [vmem:[%s196 + $0x160] sm:$0xff]
        %v221 = vld [vmem:[%s196 + $0x170] sm:$0xff]
        %v222 = vld [vmem:[%s196 + $0x180] sm:$0xff]
        %v223 = vld [vmem:[%s196 + $0x190] sm:$0xff]
        %v224 = vld [vmem:[%s196 + $0x1b0] sm:$0xff]
        %v225 = vld [vmem:[%s196 + $0x1c0] sm:$0xff]
        %v226 = vld [vmem:[%s196 + $0x1d0] sm:$0xff]
        %v227 = vld [vmem:[%s196 + $0x1e0] sm:$0xff]
        %v228 = vld [vmem:[%s196 + $0x1f0] sm:$0xff]
        %v229 = vld [vmem:[%s196 + $0x200] sm:$0xff]
        %v230 = vld [vmem:[%s196 + $0x210] sm:$0xff]
        %v231 = vld [vmem:[%s196 + $0x220] sm:$0xff]
        %v232 = vld [vmem:[%s196 + $0x1] sm:$0xff]
        %v233 = vld [vmem:[%s196 + $0x11] sm:$0xff]
        %v234 = vld [vmem:[%s196 + $0x21] sm:$0xff]
        %v235 = vld [vmem:[%s196 + $0x31] sm:$0xff]
        %v236 = vld [vmem:[%s196 + $0x41] sm:$0xff]
        %v237 = vld [vmem:[%s196 + $0x51] sm:$0xff]
        %v238 = vld [vmem:[%s196 + $0x61] sm:$0xff]
        %v239 = vld [vmem:[%s196 + $0x71] sm:$0xff]
        %v240 = vld [vmem:[%s196 + $0x81] sm:$0xff]
        %v241 = vld [vmem:[%s196 + $0x121] sm:$0xff]
        %v242 = vld [vmem:[%s196 + $0x131] sm:$0xff]
        %v243 = vld [vmem:[%s196 + $0x141] sm:$0xff]
        %v244 = vld [vmem:[%s196 + $0x151] sm:$0xff]
        %v245 = vld [vmem:[%s196 + $0x161] sm:$0xff]
        %v246 = vld [vmem:[%s196 + $0x171] sm:$0xff]
        %v247 = vld [vmem:[%s196 + $0x181] sm:$0xff]
        %v248 = vld [vmem:[%s196 + $0x191] sm:$0xff]
        %v249 = vld [vmem:[%s1] sm:$0xff]
        %v250 = vld [vmem:[%s1 + $0x8] sm:$0xff]
        %v251 = vld [vmem:[%s1 + $0x10] sm:$0xff]
        %v252 = vld [vmem:[%s1 + $0x18] sm:$0xff]
        %v253 = vld [vmem:[%s1 + $0x20] sm:$0xff]
        %v254 = vld [vmem:[%s1 + $0x28] sm:$0xff]
        %v255 = vld [vmem:[%s1 + $0x30] sm:$0xff]
        %v256 = vld [vmem:[%s1 + $0x38] sm:$0xff]
        %v257 = vld [vmem:[%s1 + $0x40] sm:$0xff]
        %v258 = vld [vmem:[%s1 + $0x48] sm:$0xff]
        %v259 = vld [vmem:[%s1 + $0x50] sm:$0xff]
        %v260 = vld [vmem:[%s1 + $0x58] sm:$0xff]
        %v261 = vld [vmem:[%s1 + $0x60] sm:$0xff]
        %v262 = vld [vmem:[%s1 + $0x68] sm:$0xff]
        %v263 = vld [vmem:[%s1 + $0x70] sm:$0xff]
        %v264 = vld [vmem:[%s1 + $0x78] sm:$0xff]
        %s265 = scalar_lea.vmem %s1, 128
        %v266 = vld [vmem:[%s265] sm:$0xff]
        %v267 = vld [vmem:[%s265 + $0x8] sm:$0xff]
        %v268 = vld [vmem:[%s265 + $0x10] sm:$0xff]
        %v269 = vld [vmem:[%s265 + $0x18] sm:$0xff]
        %v270 = vld [vmem:[%s265 + $0x20] sm:$0xff]
        %v271 = vld [vmem:[%s265 + $0x28] sm:$0xff]
        %v272 = vld [vmem:[%s265 + $0x30] sm:$0xff]
        %v273 = vld [vmem:[%s265 + $0x38] sm:$0xff]
        %v274 = vld [vmem:[%s265 + $0x40] sm:$0xff]
        %v275 = vld [vmem:[%s265 + $0x48] sm:$0xff]
        %v276 = vld [vmem:[%s265 + $0x50] sm:$0xff]
        %v277 = vld [vmem:[%s265 + $0x58] sm:$0xff]
        %v278 = vld [vmem:[%s265 + $0x60] sm:$0xff]
        %v279 = vld [vmem:[%s265 + $0x68] sm:$0xff]
        %v280 = vld [vmem:[%s265 + $0x70] sm:$0xff]
        %v281 = vld [vmem:[%s265 + $0x78] sm:$0xff]
        %282 = vmatprep.subr.mxu0 0.0
        %283 = vmatpush1.msra.mxu0 %v281
        %284 = vmatprep.subr.mxu0 0.0
        %285 = vmatpush1.msra.mxu0 %v280
        %286 = vmatprep.subr.mxu0 0.0
        %287 = vmatpush1.msra.mxu0 %v279
        %288 = vmatprep.subr.mxu0 0.0
        %289 = vmatpush1.msra.mxu0 %v278
        %290 = vmatprep.subr.mxu0 0.0
        %291 = vmatpush1.msra.mxu0 %v277
        %292 = vmatprep.subr.mxu0 0.0
        %293 = vmatpush1.msra.mxu0 %v276
        %294 = vmatprep.subr.mxu0 0.0
        %295 = vmatpush1.msra.mxu0 %v275
        %296 = vmatprep.subr.mxu0 0.0
        %297 = vmatpush1.msra.mxu0 %v274
        %298 = vmatprep.subr.mxu0 0.0
        %299 = vmatpush1.msra.mxu0 %v273
        %300 = vmatprep.subr.mxu0 0.0
        %301 = vmatpush1.msra.mxu0 %v272
        %302 = vmatprep.subr.mxu0 0.0
        %303 = vmatpush1.msra.mxu0 %v271
        %304 = vmatprep.subr.mxu0 0.0
        %305 = vmatpush1.msra.mxu0 %v270
        %306 = vmatprep.subr.mxu0 0.0
        %307 = vmatpush1.msra.mxu0 %v269
        %308 = vmatprep.subr.mxu0 0.0
        %309 = vmatpush1.msra.mxu0 %v268
        %310 = vmatprep.subr.mxu0 0.0
        %311 = vmatpush1.msra.mxu0 %v267
        %312 = vmatprep.subr.mxu0 0.0
        %313 = vmatpush1.msra.mxu0 %v266
        %314 = vmatprep.subr.mxu0 0.0
        %315 = vmatpush2.msra.mxu0 0.0
        %316 = vmatprep.subr.mxu0 0.0
        %317 = vmatpush2.msra.mxu0 0.0
        %318 = vmatprep.subr.mxu0 0.0
        %319 = vmatpush2.msra.mxu0 0.0
        %320 = vmatprep.subr.mxu0 0.0
        %321 = vmatpush2.msra.mxu0 0.0
        %322 = vmatprep.subr.mxu0 0.0
        %323 = vmatpush2.msra.mxu0 0.0
        %324 = vmatprep.subr.mxu0 0.0
        %325 = vmatpush2.msra.mxu0 0.0
        %326 = vmatprep.subr.mxu0 0.0
        %327 = vmatpush2.msra.mxu0 0.0
        %328 = vmatprep.subr.mxu0 0.0
        %329 = vmatpush2.msra.mxu0 0.0
        %330 = vmatprep.subr.mxu0 0.0
        %331 = vmatpush2.msra.mxu0 0.0
        %332 = vmatprep.subr.mxu0 0.0
        %333 = vmatpush2.msra.mxu0 0.0
        %334 = vmatprep.subr.mxu0 0.0
        %335 = vmatpush2.msra.mxu0 0.0
        %336 = vmatprep.subr.mxu0 0.0
        %337 = vmatpush2.msra.mxu0 0.0
        %338 = vmatprep.subr.mxu0 0.0
        %339 = vmatpush2.msra.mxu0 0.0
        %340 = vmatprep.subr.mxu0 0.0
        %341 = vmatpush2.msra.mxu0 0.0
        %342 = vmatprep.subr.mxu0 0.0
        %343 = vmatpush2.msra.mxu0 0.0
        %344 = vmatprep.subr.mxu0 0.0
        %345 = vmatpush2.msra.mxu0 0.0
        %346 = vmatprep.mubr.f32.mxu0 0.0
        %347 = vmatmul.mubr.f32.gmra.mxu0 %v207
        %v348 = vpop.f32.mrf.mxu0
        %v349 = vadd.f32 0.0, %v348
        %v350 = vpop.f32.mrf.mxu0
        %351 = vmatprep.mubr.f32.mxu0 0.0
        %352 = vmatmul.mubr.f32.gmra.mxu0 %v208
        %v353 = vpop.f32.mrf.mxu0
        %v354 = vadd.f32 0.0, %v353
        %v355 = vpop.f32.mrf.mxu0
        %356 = vmatprep.mubr.f32.mxu0 0.0
        %357 = vmatmul.mubr.f32.gmra.mxu0 %v209
        %v358 = vpop.f32.mrf.mxu0
        %v359 = vadd.f32 0.0, %v358
        %v360 = vpop.f32.mrf.mxu0
        %361 = vmatprep.mubr.f32.mxu0 0.0
        %362 = vmatmul.mubr.f32.gmra.mxu0 %v210
        %v363 = vpop.f32.mrf.mxu0
        %v364 = vadd.f32 0.0, %v363
        %v365 = vpop.f32.mrf.mxu0
        %366 = vmatprep.mubr.f32.mxu0 0.0
        %367 = vmatmul.mubr.f32.gmra.mxu0 %v211
        %v368 = vpop.f32.mrf.mxu0
        %v369 = vadd.f32 0.0, %v368
        %v370 = vpop.f32.mrf.mxu0
        %371 = vmatprep.mubr.f32.mxu0 0.0
        %372 = vmatmul.mubr.f32.gmra.mxu0 %v212
        %v373 = vpop.f32.mrf.mxu0
        %v374 = vadd.f32 0.0, %v373
        %v375 = vpop.f32.mrf.mxu0
        %376 = vmatprep.mubr.f32.mxu0 0.0
        %377 = vmatmul.mubr.f32.gmra.mxu0 %v213
        %v378 = vpop.f32.mrf.mxu0
        %v379 = vadd.f32 0.0, %v378
        %v380 = vpop.f32.mrf.mxu0
        %381 = vmatprep.mubr.f32.mxu0 0.0
        %382 = vmatmul.mubr.f32.gmra.mxu0 %v214
        %v383 = vpop.f32.mrf.mxu0
        %v384 = vadd.f32 0.0, %v383
        %v385 = vpop.f32.mrf.mxu0
        %386 = vdwg.mxu0
        %387 = vmatprep.subr.mxu0 0.0
        %388 = vmatpush1.msra.mxu0 %v264
        %389 = vmatprep.subr.mxu0 0.0
        %390 = vmatpush1.msra.mxu0 %v263
        %391 = vmatprep.subr.mxu0 0.0
        %392 = vmatpush1.msra.mxu0 %v262
        %393 = vmatprep.subr.mxu0 0.0
        %394 = vmatpush1.msra.mxu0 %v261
        %395 = vmatprep.subr.mxu0 0.0
        %396 = vmatpush1.msra.mxu0 %v260
        %397 = vmatprep.subr.mxu0 0.0
        %398 = vmatpush1.msra.mxu0 %v259
        %399 = vmatprep.subr.mxu0 0.0
        %400 = vmatpush1.msra.mxu0 %v258
        %401 = vmatprep.subr.mxu0 0.0
        %402 = vmatpush1.msra.mxu0 %v257
        %403 = vmatprep.subr.mxu0 0.0
        %404 = vmatpush1.msra.mxu0 %v256
        %405 = vmatprep.subr.mxu0 0.0
        %406 = vmatpush1.msra.mxu0 %v255
        %407 = vmatprep.subr.mxu0 0.0
        %408 = vmatpush1.msra.mxu0 %v254
        %409 = vmatprep.subr.mxu0 0.0
        %410 = vmatpush1.msra.mxu0 %v253
        %411 = vmatprep.subr.mxu0 0.0
        %412 = vmatpush1.msra.mxu0 %v252
        %413 = vmatprep.subr.mxu0 0.0
        %414 = vmatpush1.msra.mxu0 %v251
        %415 = vmatprep.subr.mxu0 0.0
        %416 = vmatpush1.msra.mxu0 %v250
        %417 = vmatprep.subr.mxu0 0.0
        %418 = vmatpush1.msra.mxu0 %v249
        %419 = vmatprep.subr.mxu0 0.0
        %420 = vmatpush2.msra.mxu0 0.0
        %421 = vmatprep.subr.mxu0 0.0
        %422 = vmatpush2.msra.mxu0 0.0
        %423 = vmatprep.subr.mxu0 0.0
        %424 = vmatpush2.msra.mxu0 0.0
        %425 = vmatprep.subr.mxu0 0.0
        %426 = vmatpush2.msra.mxu0 0.0
        %427 = vmatprep.subr.mxu0 0.0
        %428 = vmatpush2.msra.mxu0 0.0
        %429 = vmatprep.subr.mxu0 0.0
        %430 = vmatpush2.msra.mxu0 0.0
        %431 = vmatprep.subr.mxu0 0.0
        %432 = vmatpush2.msra.mxu0 0.0
        %433 = vmatprep.subr.mxu0 0.0
        %434 = vmatpush2.msra.mxu0 0.0
        %435 = vmatprep.subr.mxu0 0.0
        %436 = vmatpush2.msra.mxu0 0.0
        %437 = vmatprep.subr.mxu0 0.0
        %438 = vmatpush2.msra.mxu0 0.0
        %439 = vmatprep.subr.mxu0 0.0
        %440 = vmatpush2.msra.mxu0 0.0
        %441 = vmatprep.subr.mxu0 0.0
        %442 = vmatpush2.msra.mxu0 0.0
        %443 = vmatprep.subr.mxu0 0.0
        %444 = vmatpush2.msra.mxu0 0.0
        %445 = vmatprep.subr.mxu0 0.0
        %446 = vmatpush2.msra.mxu0 0.0
        %447 = vmatprep.subr.mxu0 0.0
        %448 = vmatpush2.msra.mxu0 0.0
        %449 = vmatprep.subr.mxu0 0.0
        %450 = vmatpush2.msra.mxu0 0.0
        %451 = vmatprep.mubr.f32.mxu0 0.0
        %452 = vmatmul.mubr.f32.gmra.mxu0 %v198
        %v453 = vpop.f32.mrf.mxu0
        %v454 = vadd.f32 %v349, %v453
        %v455 = vpop.f32.mrf.mxu0
        %456 = vmatprep.mubr.f32.mxu0 0.0
        %457 = vmatmul.mubr.f32.gmra.mxu0 %v199
        %v458 = vpop.f32.mrf.mxu0
        %v459 = vadd.f32 %v354, %v458
        %v460 = vpop.f32.mrf.mxu0
        %461 = vmatprep.mubr.f32.mxu0 0.0
        %462 = vmatmul.mubr.f32.gmra.mxu0 %v200
        %v463 = vpop.f32.mrf.mxu0
        %v464 = vadd.f32 %v359, %v463
        %v465 = vpop.f32.mrf.mxu0
        %466 = vmatprep.mubr.f32.mxu0 0.0
        %467 = vmatmul.mubr.f32.gmra.mxu0 %v201
        %v468 = vpop.f32.mrf.mxu0
        %v469 = vadd.f32 %v364, %v468
        %v470 = vpop.f32.mrf.mxu0
        %471 = vmatprep.mubr.f32.mxu0 0.0
        %472 = vmatmul.mubr.f32.gmra.mxu0 %v202
        %v473 = vpop.f32.mrf.mxu0
        %v474 = vadd.f32 %v369, %v473
        %v475 = vpop.f32.mrf.mxu0
        %476 = vmatprep.mubr.f32.mxu0 0.0
        %477 = vmatmul.mubr.f32.gmra.mxu0 %v203
        %v478 = vpop.f32.mrf.mxu0
        %v479 = vadd.f32 %v374, %v478
        %v480 = vpop.f32.mrf.mxu0
        %481 = vmatprep.mubr.f32.mxu0 0.0
        %482 = vmatmul.mubr.f32.gmra.mxu0 %v204
        %v483 = vpop.f32.mrf.mxu0
        %v484 = vadd.f32 %v379, %v483
        %v485 = vpop.f32.mrf.mxu0
        %486 = vmatprep.mubr.f32.mxu0 0.0
        %487 = vmatmul.mubr.f32.gmra.mxu0 %v205
        %v488 = vpop.f32.mrf.mxu0
        %v489 = vadd.f32 %v384, %v488
        %v490 = vpop.f32.mrf.mxu0
        %491 = vdwg.mxu0
        %s492 = scalar_lea.vmem %s1, 256
        %v493 = vld [vmem:[%s492] sm:$0xff]
        %v494 = vld [vmem:[%s492 + $0x8] sm:$0xff]
        %v495 = vld [vmem:[%s492 + $0x10] sm:$0xff]
        %v496 = vld [vmem:[%s492 + $0x18] sm:$0xff]
        %v497 = vld [vmem:[%s492 + $0x20] sm:$0xff]
        %v498 = vld [vmem:[%s492 + $0x28] sm:$0xff]
        %v499 = vld [vmem:[%s492 + $0x30] sm:$0xff]
        %v500 = vld [vmem:[%s492 + $0x38] sm:$0xff]
        %v501 = vld [vmem:[%s492 + $0x40] sm:$0xff]
        %v502 = vld [vmem:[%s492 + $0x48] sm:$0xff]
        %v503 = vld [vmem:[%s492 + $0x50] sm:$0xff]
        %v504 = vld [vmem:[%s492 + $0x58] sm:$0xff]
        %v505 = vld [vmem:[%s492 + $0x60] sm:$0xff]
        %v506 = vld [vmem:[%s492 + $0x68] sm:$0xff]
        %v507 = vld [vmem:[%s492 + $0x70] sm:$0xff]
        %v508 = vld [vmem:[%s492 + $0x78] sm:$0xff]
        %509 = vmatprep.subr.mxu0 0.0
        %510 = vmatpush1.msra.mxu0 %v508
        %511 = vmatprep.subr.mxu0 0.0
        %512 = vmatpush1.msra.mxu0 %v507
        %513 = vmatprep.subr.mxu0 0.0
        %514 = vmatpush1.msra.mxu0 %v506
        %515 = vmatprep.subr.mxu0 0.0
        %516 = vmatpush1.msra.mxu0 %v505
        %517 = vmatprep.subr.mxu0 0.0
        %518 = vmatpush1.msra.mxu0 %v504
        %519 = vmatprep.subr.mxu0 0.0
        %520 = vmatpush1.msra.mxu0 %v503
        %521 = vmatprep.subr.mxu0 0.0
        %522 = vmatpush1.msra.mxu0 %v502
        %523 = vmatprep.subr.mxu0 0.0
        %524 = vmatpush1.msra.mxu0 %v501
        %525 = vmatprep.subr.mxu0 0.0
        %526 = vmatpush1.msra.mxu0 %v500
        %527 = vmatprep.subr.mxu0 0.0
        %528 = vmatpush1.msra.mxu0 %v499
        %529 = vmatprep.subr.mxu0 0.0
        %530 = vmatpush1.msra.mxu0 %v498
        %531 = vmatprep.subr.mxu0 0.0
        %532 = vmatpush1.msra.mxu0 %v497
        %533 = vmatprep.subr.mxu0 0.0
        %534 = vmatpush1.msra.mxu0 %v496
        %535 = vmatprep.subr.mxu0 0.0
        %536 = vmatpush1.msra.mxu0 %v495
        %537 = vmatprep.subr.mxu0 0.0
        %538 = vmatpush1.msra.mxu0 %v494
        %539 = vmatprep.subr.mxu0 0.0
        %540 = vmatpush1.msra.mxu0 %v493
        %541 = vmatprep.subr.mxu0 0.0
        %542 = vmatpush2.msra.mxu0 0.0
        %543 = vmatprep.subr.mxu0 0.0
        %544 = vmatpush2.msra.mxu0 0.0
        %545 = vmatprep.subr.mxu0 0.0
        %546 = vmatpush2.msra.mxu0 0.0
        %547 = vmatprep.subr.mxu0 0.0
        %548 = vmatpush2.msra.mxu0 0.0
        %549 = vmatprep.subr.mxu0 0.0
        %550 = vmatpush2.msra.mxu0 0.0
        %551 = vmatprep.subr.mxu0 0.0
        %552 = vmatpush2.msra.mxu0 0.0
        %553 = vmatprep.subr.mxu0 0.0
        %554 = vmatpush2.msra.mxu0 0.0
        %555 = vmatprep.subr.mxu0 0.0
        %556 = vmatpush2.msra.mxu0 0.0
        %557 = vmatprep.subr.mxu0 0.0
        %558 = vmatpush2.msra.mxu0 0.0
        %559 = vmatprep.subr.mxu0 0.0
        %560 = vmatpush2.msra.mxu0 0.0
        %561 = vmatprep.subr.mxu0 0.0
        %562 = vmatpush2.msra.mxu0 0.0
        %563 = vmatprep.subr.mxu0 0.0
        %564 = vmatpush2.msra.mxu0 0.0
        %565 = vmatprep.subr.mxu0 0.0
        %566 = vmatpush2.msra.mxu0 0.0
        %567 = vmatprep.subr.mxu0 0.0
        %568 = vmatpush2.msra.mxu0 0.0
        %569 = vmatprep.subr.mxu0 0.0
        %570 = vmatpush2.msra.mxu0 0.0
        %571 = vmatprep.subr.mxu0 0.0
        %572 = vmatpush2.msra.mxu0 0.0
        %573 = vmatprep.mubr.f32.mxu0 0.0
        %574 = vmatmul.mubr.f32.gmra.mxu0 %v232
        %v575 = vpop.f32.mrf.mxu0
        %v576 = vadd.f32 0.0, %v575
        %v577 = vpop.f32.mrf.mxu0
        %578 = vmatprep.mubr.f32.mxu0 0.0
        %579 = vmatmul.mubr.f32.gmra.mxu0 %v233
        %v580 = vpop.f32.mrf.mxu0
        %v581 = vadd.f32 0.0, %v580
        %v582 = vpop.f32.mrf.mxu0
        %583 = vmatprep.mubr.f32.mxu0 0.0
        %584 = vmatmul.mubr.f32.gmra.mxu0 %v234
        %v585 = vpop.f32.mrf.mxu0
        %v586 = vadd.f32 0.0, %v585
        %v587 = vpop.f32.mrf.mxu0
        %588 = vmatprep.mubr.f32.mxu0 0.0
        %589 = vmatmul.mubr.f32.gmra.mxu0 %v235
        %v590 = vpop.f32.mrf.mxu0
        %v591 = vadd.f32 0.0, %v590
        %v592 = vpop.f32.mrf.mxu0
        %593 = vmatprep.mubr.f32.mxu0 0.0
        %594 = vmatmul.mubr.f32.gmra.mxu0 %v236
        %v595 = vpop.f32.mrf.mxu0
        %v596 = vadd.f32 0.0, %v595
        %v597 = vpop.f32.mrf.mxu0
        %598 = vmatprep.mubr.f32.mxu0 0.0
        %599 = vmatmul.mubr.f32.gmra.mxu0 %v237
        %v600 = vpop.f32.mrf.mxu0
        %v601 = vadd.f32 0.0, %v600
        %v602 = vpop.f32.mrf.mxu0
        %603 = vmatprep.mubr.f32.mxu0 0.0
        %604 = vmatmul.mubr.f32.gmra.mxu0 %v238
        %v605 = vpop.f32.mrf.mxu0
        %v606 = vadd.f32 0.0, %v605
        %v607 = vpop.f32.mrf.mxu0
        %608 = vmatprep.mubr.f32.mxu0 0.0
        %609 = vmatmul.mubr.f32.gmra.mxu0 %v239
        %v610 = vpop.f32.mrf.mxu0
        %v611 = vadd.f32 0.0, %v610
        %v612 = vpop.f32.mrf.mxu0
        %613 = vdwg.mxu0
        %v614 = vadd.f32 %v454, %v576
        %v615 = vadd.f32 %v459, %v581
        %v616 = vadd.f32 %v464, %v586
        %v617 = vadd.f32 %v469, %v591
        %v618 = vadd.f32 %v474, %v596
        %v619 = vadd.f32 %v479, %v601
        %v620 = vadd.f32 %v484, %v606
        %v621 = vadd.f32 %v489, %v611
        %s622 = scalar_lea.vmem %s1, 384
        %v623 = vld [vmem:[%s622] sm:$0xff]
        %v624 = vld [vmem:[%s622 + $0x8] sm:$0xff]
        %v625 = vld [vmem:[%s622 + $0x10] sm:$0xff]
        %v626 = vld [vmem:[%s622 + $0x18] sm:$0xff]
        %v627 = vld [vmem:[%s622 + $0x20] sm:$0xff]
        %v628 = vld [vmem:[%s622 + $0x28] sm:$0xff]
        %v629 = vld [vmem:[%s622 + $0x30] sm:$0xff]
        %v630 = vld [vmem:[%s622 + $0x38] sm:$0xff]
        %v631 = vld [vmem:[%s622 + $0x40] sm:$0xff]
        %v632 = vld [vmem:[%s622 + $0x48] sm:$0xff]
        %v633 = vld [vmem:[%s622 + $0x50] sm:$0xff]
        %v634 = vld [vmem:[%s622 + $0x58] sm:$0xff]
        %v635 = vld [vmem:[%s622 + $0x60] sm:$0xff]
        %v636 = vld [vmem:[%s622 + $0x68] sm:$0xff]
        %v637 = vld [vmem:[%s622 + $0x70] sm:$0xff]
        %v638 = vld [vmem:[%s622 + $0x78] sm:$0xff]
        %639 = vmatprep.subr.mxu0 0.0
        %640 = vmatpush1.msra.mxu0 %v638
        %641 = vmatprep.subr.mxu0 0.0
        %642 = vmatpush1.msra.mxu0 %v637
        %643 = vmatprep.subr.mxu0 0.0
        %644 = vmatpush1.msra.mxu0 %v636
        %645 = vmatprep.subr.mxu0 0.0
        %646 = vmatpush1.msra.mxu0 %v635
        %647 = vmatprep.subr.mxu0 0.0
        %648 = vmatpush1.msra.mxu0 %v634
        %649 = vmatprep.subr.mxu0 0.0
        %650 = vmatpush1.msra.mxu0 %v633
        %651 = vmatprep.subr.mxu0 0.0
        %652 = vmatpush1.msra.mxu0 %v632
        %653 = vmatprep.subr.mxu0 0.0
        %654 = vmatpush1.msra.mxu0 %v631
        %655 = vmatprep.subr.mxu0 0.0
        %656 = vmatpush1.msra.mxu0 %v630
        %657 = vmatprep.subr.mxu0 0.0
        %658 = vmatpush1.msra.mxu0 %v629
        %659 = vmatprep.subr.mxu0 0.0
        %660 = vmatpush1.msra.mxu0 %v628
        %661 = vmatprep.subr.mxu0 0.0
        %662 = vmatpush1.msra.mxu0 %v627
        %663 = vmatprep.subr.mxu0 0.0
        %664 = vmatpush1.msra.mxu0 %v626
        %665 = vmatprep.subr.mxu0 0.0
        %666 = vmatpush1.msra.mxu0 %v625
        %667 = vmatprep.subr.mxu0 0.0
        %668 = vmatpush1.msra.mxu0 %v624
        %669 = vmatprep.subr.mxu0 0.0
        %670 = vmatpush1.msra.mxu0 %v623
        %671 = vmatprep.subr.mxu0 0.0
        %672 = vmatpush2.msra.mxu0 0.0
        %673 = vmatprep.subr.mxu0 0.0
        %674 = vmatpush2.msra.mxu0 0.0
        %675 = vmatprep.subr.mxu0 0.0
        %676 = vmatpush2.msra.mxu0 0.0
        %677 = vmatprep.subr.mxu0 0.0
        %678 = vmatpush2.msra.mxu0 0.0
        %679 = vmatprep.subr.mxu0 0.0
        %680 = vmatpush2.msra.mxu0 0.0
        %681 = vmatprep.subr.mxu0 0.0
        %682 = vmatpush2.msra.mxu0 0.0
        %683 = vmatprep.subr.mxu0 0.0
        %684 = vmatpush2.msra.mxu0 0.0
        %685 = vmatprep.subr.mxu0 0.0
        %686 = vmatpush2.msra.mxu0 0.0
        %687 = vmatprep.subr.mxu0 0.0
        %688 = vmatpush2.msra.mxu0 0.0
        %689 = vmatprep.subr.mxu0 0.0
        %690 = vmatpush2.msra.mxu0 0.0
        %691 = vmatprep.subr.mxu0 0.0
        %692 = vmatpush2.msra.mxu0 0.0
        %693 = vmatprep.subr.mxu0 0.0
        %694 = vmatpush2.msra.mxu0 0.0
        %695 = vmatprep.subr.mxu0 0.0
        %696 = vmatpush2.msra.mxu0 0.0
        %697 = vmatprep.subr.mxu0 0.0
        %698 = vmatpush2.msra.mxu0 0.0
        %699 = vmatprep.subr.mxu0 0.0
        %700 = vmatpush2.msra.mxu0 0.0
        %701 = vmatprep.subr.mxu0 0.0
        %702 = vmatpush2.msra.mxu0 0.0
        %703 = vmatprep.mubr.f32.mxu0 0.0
        %704 = vmatmul.mubr.f32.gmra.mxu0 %v216
        %v705 = vpop.f32.mrf.mxu0
        %v706 = vadd.f32 0.0, %v705
        %v707 = vpop.f32.mrf.mxu0
        %708 = vmatprep.mubr.f32.mxu0 0.0
        %709 = vmatmul.mubr.f32.gmra.mxu0 %v217
        %v710 = vpop.f32.mrf.mxu0
        %v711 = vadd.f32 0.0, %v710
        %v712 = vpop.f32.mrf.mxu0
        %713 = vmatprep.mubr.f32.mxu0 0.0
        %714 = vmatmul.mubr.f32.gmra.mxu0 %v218
        %v715 = vpop.f32.mrf.mxu0
        %v716 = vadd.f32 0.0, %v715
        %v717 = vpop.f32.mrf.mxu0
        %718 = vmatprep.mubr.f32.mxu0 0.0
        %719 = vmatmul.mubr.f32.gmra.mxu0 %v219
        %v720 = vpop.f32.mrf.mxu0
        %v721 = vadd.f32 0.0, %v720
        %v722 = vpop.f32.mrf.mxu0
        %723 = vmatprep.mubr.f32.mxu0 0.0
        %724 = vmatmul.mubr.f32.gmra.mxu0 %v220
        %v725 = vpop.f32.mrf.mxu0
        %v726 = vadd.f32 0.0, %v725
        %v727 = vpop.f32.mrf.mxu0
        %728 = vmatprep.mubr.f32.mxu0 0.0
        %729 = vmatmul.mubr.f32.gmra.mxu0 %v221
        %v730 = vpop.f32.mrf.mxu0
        %v731 = vadd.f32 0.0, %v730
        %v732 = vpop.f32.mrf.mxu0
        %733 = vmatprep.mubr.f32.mxu0 0.0
        %734 = vmatmul.mubr.f32.gmra.mxu0 %v222
        %v735 = vpop.f32.mrf.mxu0
        %v736 = vadd.f32 0.0, %v735
        %v737 = vpop.f32.mrf.mxu0
        %738 = vmatprep.mubr.f32.mxu0 0.0
        %739 = vmatmul.mubr.f32.gmra.mxu0 %v223
        %v740 = vpop.f32.mrf.mxu0
        %v741 = vadd.f32 0.0, %v740
        %v742 = vpop.f32.mrf.mxu0
        %743 = vdwg.mxu0
        %v744 = vadd.f32 %v614, %v706
        %v745 = vadd.f32 %v615, %v711
        %v746 = vadd.f32 %v616, %v716
        %v747 = vadd.f32 %v617, %v721
        %v748 = vadd.f32 %v618, %v726
        %v749 = vadd.f32 %v619, %v731
        %v750 = vadd.f32 %v620, %v736
        %v751 = vadd.f32 %v621, %v741
        %s752 = scalar_lea.vmem %s1, 512
        %v753 = vld [vmem:[%s752] sm:$0xff]
        %v754 = vld [vmem:[%s752 + $0x8] sm:$0xff]
        %v755 = vld [vmem:[%s752 + $0x10] sm:$0xff]
        %v756 = vld [vmem:[%s752 + $0x18] sm:$0xff]
        %v757 = vld [vmem:[%s752 + $0x20] sm:$0xff]
        %v758 = vld [vmem:[%s752 + $0x28] sm:$0xff]
        %v759 = vld [vmem:[%s752 + $0x30] sm:$0xff]
        %v760 = vld [vmem:[%s752 + $0x38] sm:$0xff]
        %v761 = vld [vmem:[%s752 + $0x40] sm:$0xff]
        %v762 = vld [vmem:[%s752 + $0x48] sm:$0xff]
        %v763 = vld [vmem:[%s752 + $0x50] sm:$0xff]
        %v764 = vld [vmem:[%s752 + $0x58] sm:$0xff]
        %v765 = vld [vmem:[%s752 + $0x60] sm:$0xff]
        %v766 = vld [vmem:[%s752 + $0x68] sm:$0xff]
        %v767 = vld [vmem:[%s752 + $0x70] sm:$0xff]
        %v768 = vld [vmem:[%s752 + $0x78] sm:$0xff]
        %769 = vmatprep.subr.mxu0 0.0
        %770 = vmatpush1.msra.mxu0 %v768
        %771 = vmatprep.subr.mxu0 0.0
        %772 = vmatpush1.msra.mxu0 %v767
        %773 = vmatprep.subr.mxu0 0.0
        %774 = vmatpush1.msra.mxu0 %v766
        %775 = vmatprep.subr.mxu0 0.0
        %776 = vmatpush1.msra.mxu0 %v765
        %777 = vmatprep.subr.mxu0 0.0
        %778 = vmatpush1.msra.mxu0 %v764
        %779 = vmatprep.subr.mxu0 0.0
        %780 = vmatpush1.msra.mxu0 %v763
        %781 = vmatprep.subr.mxu0 0.0
        %782 = vmatpush1.msra.mxu0 %v762
        %783 = vmatprep.subr.mxu0 0.0
        %784 = vmatpush1.msra.mxu0 %v761
        %785 = vmatprep.subr.mxu0 0.0
        %786 = vmatpush1.msra.mxu0 %v760
        %787 = vmatprep.subr.mxu0 0.0
        %788 = vmatpush1.msra.mxu0 %v759
        %789 = vmatprep.subr.mxu0 0.0
        %790 = vmatpush1.msra.mxu0 %v758
        %791 = vmatprep.subr.mxu0 0.0
        %792 = vmatpush1.msra.mxu0 %v757
        %793 = vmatprep.subr.mxu0 0.0
        %794 = vmatpush1.msra.mxu0 %v756
        %795 = vmatprep.subr.mxu0 0.0
        %796 = vmatpush1.msra.mxu0 %v755
        %797 = vmatprep.subr.mxu0 0.0
        %798 = vmatpush1.msra.mxu0 %v754
        %799 = vmatprep.subr.mxu0 0.0
        %800 = vmatpush1.msra.mxu0 %v753
        %801 = vmatprep.subr.mxu0 0.0
        %802 = vmatpush2.msra.mxu0 0.0
        %803 = vmatprep.subr.mxu0 0.0
        %804 = vmatpush2.msra.mxu0 0.0
        %805 = vmatprep.subr.mxu0 0.0
        %806 = vmatpush2.msra.mxu0 0.0
        %807 = vmatprep.subr.mxu0 0.0
        %808 = vmatpush2.msra.mxu0 0.0
        %809 = vmatprep.subr.mxu0 0.0
        %810 = vmatpush2.msra.mxu0 0.0
        %811 = vmatprep.subr.mxu0 0.0
        %812 = vmatpush2.msra.mxu0 0.0
        %813 = vmatprep.subr.mxu0 0.0
        %814 = vmatpush2.msra.mxu0 0.0
        %815 = vmatprep.subr.mxu0 0.0
        %816 = vmatpush2.msra.mxu0 0.0
        %817 = vmatprep.subr.mxu0 0.0
        %818 = vmatpush2.msra.mxu0 0.0
        %819 = vmatprep.subr.mxu0 0.0
        %820 = vmatpush2.msra.mxu0 0.0
        %821 = vmatprep.subr.mxu0 0.0
        %822 = vmatpush2.msra.mxu0 0.0
        %823 = vmatprep.subr.mxu0 0.0
        %824 = vmatpush2.msra.mxu0 0.0
        %825 = vmatprep.subr.mxu0 0.0
        %826 = vmatpush2.msra.mxu0 0.0
        %827 = vmatprep.subr.mxu0 0.0
        %828 = vmatpush2.msra.mxu0 0.0
        %829 = vmatprep.subr.mxu0 0.0
        %830 = vmatpush2.msra.mxu0 0.0
        %831 = vmatprep.subr.mxu0 0.0
        %832 = vmatpush2.msra.mxu0 0.0
        %833 = vmatprep.mubr.f32.mxu0 0.0
        %834 = vmatmul.mubr.f32.gmra.mxu0 %v224
        %v835 = vpop.f32.mrf.mxu0
        %v836 = vadd.f32 0.0, %v835
        %v837 = vpop.f32.mrf.mxu0
        %838 = vmatprep.mubr.f32.mxu0 0.0
        %839 = vmatmul.mubr.f32.gmra.mxu0 %v225
        %v840 = vpop.f32.mrf.mxu0
        %v841 = vadd.f32 0.0, %v840
        %v842 = vpop.f32.mrf.mxu0
        %843 = vmatprep.mubr.f32.mxu0 0.0
        %844 = vmatmul.mubr.f32.gmra.mxu0 %v226
        %v845 = vpop.f32.mrf.mxu0
        %v846 = vadd.f32 0.0, %v845
        %v847 = vpop.f32.mrf.mxu0
        %848 = vmatprep.mubr.f32.mxu0 0.0
        %849 = vmatmul.mubr.f32.gmra.mxu0 %v227
        %v850 = vpop.f32.mrf.mxu0
        %v851 = vadd.f32 0.0, %v850
        %v852 = vpop.f32.mrf.mxu0
        %853 = vmatprep.mubr.f32.mxu0 0.0
        %854 = vmatmul.mubr.f32.gmra.mxu0 %v228
        %v855 = vpop.f32.mrf.mxu0
        %v856 = vadd.f32 0.0, %v855
        %v857 = vpop.f32.mrf.mxu0
        %858 = vmatprep.mubr.f32.mxu0 0.0
        %859 = vmatmul.mubr.f32.gmra.mxu0 %v229
        %v860 = vpop.f32.mrf.mxu0
        %v861 = vadd.f32 0.0, %v860
        %v862 = vpop.f32.mrf.mxu0
        %863 = vmatprep.mubr.f32.mxu0 0.0
        %864 = vmatmul.mubr.f32.gmra.mxu0 %v230
        %v865 = vpop.f32.mrf.mxu0
        %v866 = vadd.f32 0.0, %v865
        %v867 = vpop.f32.mrf.mxu0
        %868 = vmatprep.mubr.f32.mxu0 0.0
        %869 = vmatmul.mubr.f32.gmra.mxu0 %v231
        %v870 = vpop.f32.mrf.mxu0
        %v871 = vadd.f32 0.0, %v870
        %v872 = vpop.f32.mrf.mxu0
        %873 = vdwg.mxu0
        %v874 = vadd.f32 %v744, %v836
        %v875 = vadd.f32 %v745, %v841
        %v876 = vadd.f32 %v746, %v846
        %v877 = vadd.f32 %v747, %v851
        %v878 = vadd.f32 %v748, %v856
        %v879 = vadd.f32 %v749, %v861
        %v880 = vadd.f32 %v750, %v866
        %v881 = vadd.f32 %v751, %v871
        %s882 = scalar_lea.vmem %s1, 640
        %v883 = vld [vmem:[%s882] sm:$0xff]
        %v884 = vld [vmem:[%s882 + $0x8] sm:$0xff]
        %v885 = vld [vmem:[%s882 + $0x10] sm:$0xff]
        %v886 = vld [vmem:[%s882 + $0x18] sm:$0xff]
        %v887 = vld [vmem:[%s882 + $0x20] sm:$0xff]
        %v888 = vld [vmem:[%s882 + $0x28] sm:$0xff]
        %v889 = vld [vmem:[%s882 + $0x30] sm:$0xff]
        %v890 = vld [vmem:[%s882 + $0x38] sm:$0xff]
        %v891 = vld [vmem:[%s882 + $0x40] sm:$0xff]
        %v892 = vld [vmem:[%s882 + $0x48] sm:$0xff]
        %v893 = vld [vmem:[%s882 + $0x50] sm:$0xff]
        %v894 = vld [vmem:[%s882 + $0x58] sm:$0xff]
        %v895 = vld [vmem:[%s882 + $0x60] sm:$0xff]
        %v896 = vld [vmem:[%s882 + $0x68] sm:$0xff]
        %v897 = vld [vmem:[%s882 + $0x70] sm:$0xff]
        %v898 = vld [vmem:[%s882 + $0x78] sm:$0xff]
        %899 = vmatprep.subr.mxu0 0.0
        %900 = vmatpush1.msra.mxu0 %v898
        %901 = vmatprep.subr.mxu0 0.0
        %902 = vmatpush1.msra.mxu0 %v897
        %903 = vmatprep.subr.mxu0 0.0
        %904 = vmatpush1.msra.mxu0 %v896
        %905 = vmatprep.subr.mxu0 0.0
        %906 = vmatpush1.msra.mxu0 %v895
        %907 = vmatprep.subr.mxu0 0.0
        %908 = vmatpush1.msra.mxu0 %v894
        %909 = vmatprep.subr.mxu0 0.0
        %910 = vmatpush1.msra.mxu0 %v893
        %911 = vmatprep.subr.mxu0 0.0
        %912 = vmatpush1.msra.mxu0 %v892
        %913 = vmatprep.subr.mxu0 0.0
        %914 = vmatpush1.msra.mxu0 %v891
        %915 = vmatprep.subr.mxu0 0.0
        %916 = vmatpush1.msra.mxu0 %v890
        %917 = vmatprep.subr.mxu0 0.0
        %918 = vmatpush1.msra.mxu0 %v889
        %919 = vmatprep.subr.mxu0 0.0
        %920 = vmatpush1.msra.mxu0 %v888
        %921 = vmatprep.subr.mxu0 0.0
        %922 = vmatpush1.msra.mxu0 %v887
        %923 = vmatprep.subr.mxu0 0.0
        %924 = vmatpush1.msra.mxu0 %v886
        %925 = vmatprep.subr.mxu0 0.0
        %926 = vmatpush1.msra.mxu0 %v885
        %927 = vmatprep.subr.mxu0 0.0
        %928 = vmatpush1.msra.mxu0 %v884
        %929 = vmatprep.subr.mxu0 0.0
        %930 = vmatpush1.msra.mxu0 %v883
        %931 = vmatprep.subr.mxu0 0.0
        %932 = vmatpush2.msra.mxu0 0.0
        %933 = vmatprep.subr.mxu0 0.0
        %934 = vmatpush2.msra.mxu0 0.0
        %935 = vmatprep.subr.mxu0 0.0
        %936 = vmatpush2.msra.mxu0 0.0
        %937 = vmatprep.subr.mxu0 0.0
        %938 = vmatpush2.msra.mxu0 0.0
        %939 = vmatprep.subr.mxu0 0.0
        %940 = vmatpush2.msra.mxu0 0.0
        %941 = vmatprep.subr.mxu0 0.0
        %942 = vmatpush2.msra.mxu0 0.0
        %943 = vmatprep.subr.mxu0 0.0
        %944 = vmatpush2.msra.mxu0 0.0
        %945 = vmatprep.subr.mxu0 0.0
        %946 = vmatpush2.msra.mxu0 0.0
        %947 = vmatprep.subr.mxu0 0.0
        %948 = vmatpush2.msra.mxu0 0.0
        %949 = vmatprep.subr.mxu0 0.0
        %950 = vmatpush2.msra.mxu0 0.0
        %951 = vmatprep.subr.mxu0 0.0
        %952 = vmatpush2.msra.mxu0 0.0
        %953 = vmatprep.subr.mxu0 0.0
        %954 = vmatpush2.msra.mxu0 0.0
        %955 = vmatprep.subr.mxu0 0.0
        %956 = vmatpush2.msra.mxu0 0.0
        %957 = vmatprep.subr.mxu0 0.0
        %958 = vmatpush2.msra.mxu0 0.0
        %959 = vmatprep.subr.mxu0 0.0
        %960 = vmatpush2.msra.mxu0 0.0
        %961 = vmatprep.subr.mxu0 0.0
        %962 = vmatpush2.msra.mxu0 0.0
        %963 = vmatprep.mubr.f32.mxu0 0.0
        %964 = vmatmul.mubr.f32.gmra.mxu0 %v241
        %v965 = vpop.f32.mrf.mxu0
        %v966 = vadd.f32 0.0, %v965
        %v967 = vpop.f32.mrf.mxu0
        %968 = vmatprep.mubr.f32.mxu0 0.0
        %969 = vmatmul.mubr.f32.gmra.mxu0 %v242
        %v970 = vpop.f32.mrf.mxu0
        %v971 = vadd.f32 0.0, %v970
        %v972 = vpop.f32.mrf.mxu0
        %973 = vmatprep.mubr.f32.mxu0 0.0
        %974 = vmatmul.mubr.f32.gmra.mxu0 %v243
        %v975 = vpop.f32.mrf.mxu0
        %v976 = vadd.f32 0.0, %v975
        %v977 = vpop.f32.mrf.mxu0
        %978 = vmatprep.mubr.f32.mxu0 0.0
        %979 = vmatmul.mubr.f32.gmra.mxu0 %v244
        %v980 = vpop.f32.mrf.mxu0
        %v981 = vadd.f32 0.0, %v980
        %v982 = vpop.f32.mrf.mxu0
        %983 = vmatprep.mubr.f32.mxu0 0.0
        %984 = vmatmul.mubr.f32.gmra.mxu0 %v245
        %v985 = vpop.f32.mrf.mxu0
        %v986 = vadd.f32 0.0, %v985
        %v987 = vpop.f32.mrf.mxu0
        %988 = vmatprep.mubr.f32.mxu0 0.0
        %989 = vmatmul.mubr.f32.gmra.mxu0 %v246
        %v990 = vpop.f32.mrf.mxu0
        %v991 = vadd.f32 0.0, %v990
        %v992 = vpop.f32.mrf.mxu0
        %993 = vmatprep.mubr.f32.mxu0 0.0
        %994 = vmatmul.mubr.f32.gmra.mxu0 %v247
        %v995 = vpop.f32.mrf.mxu0
        %v996 = vadd.f32 0.0, %v995
        %v997 = vpop.f32.mrf.mxu0
        %998 = vmatprep.mubr.f32.mxu0 0.0
        %999 = vmatmul.mubr.f32.gmra.mxu0 %v248
        %v1000 = vpop.f32.mrf.mxu0
        %v1001 = vadd.f32 0.0, %v1000
        %v1002 = vpop.f32.mrf.mxu0
        %1003 = vdwg.mxu0
        %v1004 = vadd.f32 %v874, %v966
        %v1005 = vadd.f32 %v875, %v971
        %v1006 = vadd.f32 %v876, %v976
        %v1007 = vadd.f32 %v877, %v981
        %v1008 = vadd.f32 %v878, %v986
        %v1009 = vadd.f32 %v879, %v991
        %v1010 = vadd.f32 %v880, %v996
        %v1011 = vadd.f32 %v881, %v1001
        %s1012 = scalar_lea.vmem %s1, 768
        %v1013 = vld [vmem:[%s1012] sm:$0xff]
        %v1014 = vld [vmem:[%s1012 + $0x8] sm:$0xff]
        %v1015 = vld [vmem:[%s1012 + $0x10] sm:$0xff]
        %v1016 = vld [vmem:[%s1012 + $0x18] sm:$0xff]
        %v1017 = vld [vmem:[%s1012 + $0x20] sm:$0xff]
        %v1018 = vld [vmem:[%s1012 + $0x28] sm:$0xff]
        %v1019 = vld [vmem:[%s1012 + $0x30] sm:$0xff]
        %v1020 = vld [vmem:[%s1012 + $0x38] sm:$0xff]
        %v1021 = vld [vmem:[%s1012 + $0x40] sm:$0xff]
        %v1022 = vld [vmem:[%s1012 + $0x48] sm:$0xff]
        %v1023 = vld [vmem:[%s1012 + $0x50] sm:$0xff]
        %v1024 = vld [vmem:[%s1012 + $0x58] sm:$0xff]
        %v1025 = vld [vmem:[%s1012 + $0x60] sm:$0xff]
        %v1026 = vld [vmem:[%s1012 + $0x68] sm:$0xff]
        %v1027 = vld [vmem:[%s1012 + $0x70] sm:$0xff]
        %v1028 = vld [vmem:[%s1012 + $0x78] sm:$0xff]
        %1029 = vmatprep.subr.mxu0 0.0
        %1030 = vmatpush1.msra.mxu0 %v1028
        %1031 = vmatprep.subr.mxu0 0.0
        %1032 = vmatpush1.msra.mxu0 %v1027
        %1033 = vmatprep.subr.mxu0 0.0
        %1034 = vmatpush1.msra.mxu0 %v1026
        %1035 = vmatprep.subr.mxu0 0.0
        %1036 = vmatpush1.msra.mxu0 %v1025
        %1037 = vmatprep.subr.mxu0 0.0
        %1038 = vmatpush1.msra.mxu0 %v1024
        %1039 = vmatprep.subr.mxu0 0.0
        %1040 = vmatpush1.msra.mxu0 %v1023
        %1041 = vmatprep.subr.mxu0 0.0
        %1042 = vmatpush1.msra.mxu0 %v1022
        %1043 = vmatprep.subr.mxu0 0.0
        %1044 = vmatpush1.msra.mxu0 %v1021
        %1045 = vmatprep.subr.mxu0 0.0
        %1046 = vmatpush1.msra.mxu0 %v1020
        %1047 = vmatprep.subr.mxu0 0.0
        %1048 = vmatpush1.msra.mxu0 %v1019
        %1049 = vmatprep.subr.mxu0 0.0
        %1050 = vmatpush1.msra.mxu0 %v1018
        %1051 = vmatprep.subr.mxu0 0.0
        %1052 = vmatpush1.msra.mxu0 %v1017
        %1053 = vmatprep.subr.mxu0 0.0
        %1054 = vmatpush1.msra.mxu0 %v1016
        %1055 = vmatprep.subr.mxu0 0.0
        %1056 = vmatpush1.msra.mxu0 %v1015
        %1057 = vmatprep.subr.mxu0 0.0
        %1058 = vmatpush1.msra.mxu0 %v1014
        %1059 = vmatprep.subr.mxu0 0.0
        %1060 = vmatpush1.msra.mxu0 %v1013
        %1061 = vmatprep.subr.mxu0 0.0
        %1062 = vmatpush2.msra.mxu0 0.0
        %1063 = vmatprep.subr.mxu0 0.0
        %1064 = vmatpush2.msra.mxu0 0.0
        %1065 = vmatprep.subr.mxu0 0.0
        %1066 = vmatpush2.msra.mxu0 0.0
        %1067 = vmatprep.subr.mxu0 0.0
        %1068 = vmatpush2.msra.mxu0 0.0
        %1069 = vmatprep.subr.mxu0 0.0
        %1070 = vmatpush2.msra.mxu0 0.0
        %1071 = vmatprep.subr.mxu0 0.0
        %1072 = vmatpush2.msra.mxu0 0.0
        %1073 = vmatprep.subr.mxu0 0.0
        %1074 = vmatpush2.msra.mxu0 0.0
        %1075 = vmatprep.subr.mxu0 0.0
        %1076 = vmatpush2.msra.mxu0 0.0
        %1077 = vmatprep.subr.mxu0 0.0
        %1078 = vmatpush2.msra.mxu0 0.0
        %1079 = vmatprep.subr.mxu0 0.0
        %1080 = vmatpush2.msra.mxu0 0.0
        %1081 = vmatprep.subr.mxu0 0.0
        %1082 = vmatpush2.msra.mxu0 0.0
        %1083 = vmatprep.subr.mxu0 0.0
        %1084 = vmatpush2.msra.mxu0 0.0
        %1085 = vmatprep.subr.mxu0 0.0
        %1086 = vmatpush2.msra.mxu0 0.0
        %1087 = vmatprep.subr.mxu0 0.0
        %1088 = vmatpush2.msra.mxu0 0.0
        %1089 = vmatprep.subr.mxu0 0.0
        %1090 = vmatpush2.msra.mxu0 0.0
        %1091 = vmatprep.subr.mxu0 0.0
        %1092 = vmatpush2.msra.mxu0 0.0
        %1093 = vmatprep.mubr.f32.mxu0 0.0
        %1094 = vmatmul.mubr.f32.gmra.mxu0 %v199
        %v1095 = vpop.f32.mrf.mxu0
        %v1096 = vadd.f32 0.0, %v1095
        %v1097 = vpop.f32.mrf.mxu0
        %1098 = vmatprep.mubr.f32.mxu0 0.0
        %1099 = vmatmul.mubr.f32.gmra.mxu0 %v200
        %v1100 = vpop.f32.mrf.mxu0
        %v1101 = vadd.f32 0.0, %v1100
        %v1102 = vpop.f32.mrf.mxu0
        %1103 = vmatprep.mubr.f32.mxu0 0.0
        %1104 = vmatmul.mubr.f32.gmra.mxu0 %v201
        %v1105 = vpop.f32.mrf.mxu0
        %v1106 = vadd.f32 0.0, %v1105
        %v1107 = vpop.f32.mrf.mxu0
        %1108 = vmatprep.mubr.f32.mxu0 0.0
        %1109 = vmatmul.mubr.f32.gmra.mxu0 %v202
        %v1110 = vpop.f32.mrf.mxu0
        %v1111 = vadd.f32 0.0, %v1110
        %v1112 = vpop.f32.mrf.mxu0
        %1113 = vmatprep.mubr.f32.mxu0 0.0
        %1114 = vmatmul.mubr.f32.gmra.mxu0 %v203
        %v1115 = vpop.f32.mrf.mxu0
        %v1116 = vadd.f32 0.0, %v1115
        %v1117 = vpop.f32.mrf.mxu0
        %1118 = vmatprep.mubr.f32.mxu0 0.0
        %1119 = vmatmul.mubr.f32.gmra.mxu0 %v204
        %v1120 = vpop.f32.mrf.mxu0
        %v1121 = vadd.f32 0.0, %v1120
        %v1122 = vpop.f32.mrf.mxu0
        %1123 = vmatprep.mubr.f32.mxu0 0.0
        %1124 = vmatmul.mubr.f32.gmra.mxu0 %v205
        %v1125 = vpop.f32.mrf.mxu0
        %v1126 = vadd.f32 0.0, %v1125
        %v1127 = vpop.f32.mrf.mxu0
        %1128 = vmatprep.mubr.f32.mxu0 0.0
        %1129 = vmatmul.mubr.f32.gmra.mxu0 %v206
        %v1130 = vpop.f32.mrf.mxu0
        %v1131 = vadd.f32 0.0, %v1130
        %v1132 = vpop.f32.mrf.mxu0
        %1133 = vdwg.mxu0
        %v1134 = vadd.f32 %v1004, %v1096
        %v1135 = vadd.f32 %v1005, %v1101
        %v1136 = vadd.f32 %v1006, %v1106
        %v1137 = vadd.f32 %v1007, %v1111
        %v1138 = vadd.f32 %v1008, %v1116
        %v1139 = vadd.f32 %v1009, %v1121
        %v1140 = vadd.f32 %v1010, %v1126
        %v1141 = vadd.f32 %v1011, %v1131
        %s1142 = scalar_lea.vmem %s1, 896
        %v1143 = vld [vmem:[%s1142] sm:$0xff]
        %v1144 = vld [vmem:[%s1142 + $0x8] sm:$0xff]
        %v1145 = vld [vmem:[%s1142 + $0x10] sm:$0xff]
        %v1146 = vld [vmem:[%s1142 + $0x18] sm:$0xff]
        %v1147 = vld [vmem:[%s1142 + $0x20] sm:$0xff]
        %v1148 = vld [vmem:[%s1142 + $0x28] sm:$0xff]
        %v1149 = vld [vmem:[%s1142 + $0x30] sm:$0xff]
        %v1150 = vld [vmem:[%s1142 + $0x38] sm:$0xff]
        %v1151 = vld [vmem:[%s1142 + $0x40] sm:$0xff]
        %v1152 = vld [vmem:[%s1142 + $0x48] sm:$0xff]
        %v1153 = vld [vmem:[%s1142 + $0x50] sm:$0xff]
        %v1154 = vld [vmem:[%s1142 + $0x58] sm:$0xff]
        %v1155 = vld [vmem:[%s1142 + $0x60] sm:$0xff]
        %v1156 = vld [vmem:[%s1142 + $0x68] sm:$0xff]
        %v1157 = vld [vmem:[%s1142 + $0x70] sm:$0xff]
        %v1158 = vld [vmem:[%s1142 + $0x78] sm:$0xff]
        %1159 = vmatprep.subr.mxu0 0.0
        %1160 = vmatpush1.msra.mxu0 %v1158
        %1161 = vmatprep.subr.mxu0 0.0
        %1162 = vmatpush1.msra.mxu0 %v1157
        %1163 = vmatprep.subr.mxu0 0.0
        %1164 = vmatpush1.msra.mxu0 %v1156
        %1165 = vmatprep.subr.mxu0 0.0
        %1166 = vmatpush1.msra.mxu0 %v1155
        %1167 = vmatprep.subr.mxu0 0.0
        %1168 = vmatpush1.msra.mxu0 %v1154
        %1169 = vmatprep.subr.mxu0 0.0
        %1170 = vmatpush1.msra.mxu0 %v1153
        %1171 = vmatprep.subr.mxu0 0.0
        %1172 = vmatpush1.msra.mxu0 %v1152
        %1173 = vmatprep.subr.mxu0 0.0
        %1174 = vmatpush1.msra.mxu0 %v1151
        %1175 = vmatprep.subr.mxu0 0.0
        %1176 = vmatpush1.msra.mxu0 %v1150
        %1177 = vmatprep.subr.mxu0 0.0
        %1178 = vmatpush1.msra.mxu0 %v1149
        %1179 = vmatprep.subr.mxu0 0.0
        %1180 = vmatpush1.msra.mxu0 %v1148
        %1181 = vmatprep.subr.mxu0 0.0
        %1182 = vmatpush1.msra.mxu0 %v1147
        %1183 = vmatprep.subr.mxu0 0.0
        %1184 = vmatpush1.msra.mxu0 %v1146
        %1185 = vmatprep.subr.mxu0 0.0
        %1186 = vmatpush1.msra.mxu0 %v1145
        %1187 = vmatprep.subr.mxu0 0.0
        %1188 = vmatpush1.msra.mxu0 %v1144
        %1189 = vmatprep.subr.mxu0 0.0
        %1190 = vmatpush1.msra.mxu0 %v1143
        %1191 = vmatprep.subr.mxu0 0.0
        %1192 = vmatpush2.msra.mxu0 0.0
        %1193 = vmatprep.subr.mxu0 0.0
        %1194 = vmatpush2.msra.mxu0 0.0
        %1195 = vmatprep.subr.mxu0 0.0
        %1196 = vmatpush2.msra.mxu0 0.0
        %1197 = vmatprep.subr.mxu0 0.0
        %1198 = vmatpush2.msra.mxu0 0.0
        %1199 = vmatprep.subr.mxu0 0.0
        %1200 = vmatpush2.msra.mxu0 0.0
        %1201 = vmatprep.subr.mxu0 0.0
        %1202 = vmatpush2.msra.mxu0 0.0
        %1203 = vmatprep.subr.mxu0 0.0
        %1204 = vmatpush2.msra.mxu0 0.0
        %1205 = vmatprep.subr.mxu0 0.0
        %1206 = vmatpush2.msra.mxu0 0.0
        %1207 = vmatprep.subr.mxu0 0.0
        %1208 = vmatpush2.msra.mxu0 0.0
        %1209 = vmatprep.subr.mxu0 0.0
        %1210 = vmatpush2.msra.mxu0 0.0
        %1211 = vmatprep.subr.mxu0 0.0
        %1212 = vmatpush2.msra.mxu0 0.0
        %1213 = vmatprep.subr.mxu0 0.0
        %1214 = vmatpush2.msra.mxu0 0.0
        %1215 = vmatprep.subr.mxu0 0.0
        %1216 = vmatpush2.msra.mxu0 0.0
        %1217 = vmatprep.subr.mxu0 0.0
        %1218 = vmatpush2.msra.mxu0 0.0
        %1219 = vmatprep.subr.mxu0 0.0
        %1220 = vmatpush2.msra.mxu0 0.0
        %1221 = vmatprep.subr.mxu0 0.0
        %1222 = vmatpush2.msra.mxu0 0.0
        %1223 = vmatprep.mubr.f32.mxu0 0.0
        %1224 = vmatmul.mubr.f32.gmra.mxu0 %v208
        %v1225 = vpop.f32.mrf.mxu0
        %v1226 = vadd.f32 0.0, %v1225
        %v1227 = vpop.f32.mrf.mxu0
        %1228 = vmatprep.mubr.f32.mxu0 0.0
        %1229 = vmatmul.mubr.f32.gmra.mxu0 %v209
        %v1230 = vpop.f32.mrf.mxu0
        %v1231 = vadd.f32 0.0, %v1230
        %v1232 = vpop.f32.mrf.mxu0
        %1233 = vmatprep.mubr.f32.mxu0 0.0
        %1234 = vmatmul.mubr.f32.gmra.mxu0 %v210
        %v1235 = vpop.f32.mrf.mxu0
        %v1236 = vadd.f32 0.0, %v1235
        %v1237 = vpop.f32.mrf.mxu0
        %1238 = vmatprep.mubr.f32.mxu0 0.0
        %1239 = vmatmul.mubr.f32.gmra.mxu0 %v211
        %v1240 = vpop.f32.mrf.mxu0
        %v1241 = vadd.f32 0.0, %v1240
        %v1242 = vpop.f32.mrf.mxu0
        %1243 = vmatprep.mubr.f32.mxu0 0.0
        %1244 = vmatmul.mubr.f32.gmra.mxu0 %v212
        %v1245 = vpop.f32.mrf.mxu0
        %v1246 = vadd.f32 0.0, %v1245
        %v1247 = vpop.f32.mrf.mxu0
        %1248 = vmatprep.mubr.f32.mxu0 0.0
        %1249 = vmatmul.mubr.f32.gmra.mxu0 %v213
        %v1250 = vpop.f32.mrf.mxu0
        %v1251 = vadd.f32 0.0, %v1250
        %v1252 = vpop.f32.mrf.mxu0
        %1253 = vmatprep.mubr.f32.mxu0 0.0
        %1254 = vmatmul.mubr.f32.gmra.mxu0 %v214
        %v1255 = vpop.f32.mrf.mxu0
        %v1256 = vadd.f32 0.0, %v1255
        %v1257 = vpop.f32.mrf.mxu0
        %1258 = vmatprep.mubr.f32.mxu0 0.0
        %1259 = vmatmul.mubr.f32.gmra.mxu0 %v215
        %v1260 = vpop.f32.mrf.mxu0
        %v1261 = vadd.f32 0.0, %v1260
        %v1262 = vpop.f32.mrf.mxu0
        %1263 = vdwg.mxu0
        %v1264 = vadd.f32 %v1134, %v1226
        %v1265 = vadd.f32 %v1135, %v1231
        %v1266 = vadd.f32 %v1136, %v1236
        %v1267 = vadd.f32 %v1137, %v1241
        %v1268 = vadd.f32 %v1138, %v1246
        %v1269 = vadd.f32 %v1139, %v1251
        %v1270 = vadd.f32 %v1140, %v1256
        %v1271 = vadd.f32 %v1141, %v1261
        %s1272 = scalar_lea.vmem %s1, 1024
        %v1273 = vld [vmem:[%s1272] sm:$0xff]
        %v1274 = vld [vmem:[%s1272 + $0x8] sm:$0xff]
        %v1275 = vld [vmem:[%s1272 + $0x10] sm:$0xff]
        %v1276 = vld [vmem:[%s1272 + $0x18] sm:$0xff]
        %v1277 = vld [vmem:[%s1272 + $0x20] sm:$0xff]
        %v1278 = vld [vmem:[%s1272 + $0x28] sm:$0xff]
        %v1279 = vld [vmem:[%s1272 + $0x30] sm:$0xff]
        %v1280 = vld [vmem:[%s1272 + $0x38] sm:$0xff]
        %v1281 = vld [vmem:[%s1272 + $0x40] sm:$0xff]
        %v1282 = vld [vmem:[%s1272 + $0x48] sm:$0xff]
        %v1283 = vld [vmem:[%s1272 + $0x50] sm:$0xff]
        %v1284 = vld [vmem:[%s1272 + $0x58] sm:$0xff]
        %v1285 = vld [vmem:[%s1272 + $0x60] sm:$0xff]
        %v1286 = vld [vmem:[%s1272 + $0x68] sm:$0xff]
        %v1287 = vld [vmem:[%s1272 + $0x70] sm:$0xff]
        %v1288 = vld [vmem:[%s1272 + $0x78] sm:$0xff]
        %1289 = vmatprep.subr.mxu0 0.0
        %1290 = vmatpush1.msra.mxu0 %v1288
        %1291 = vmatprep.subr.mxu0 0.0
        %1292 = vmatpush1.msra.mxu0 %v1287
        %1293 = vmatprep.subr.mxu0 0.0
        %1294 = vmatpush1.msra.mxu0 %v1286
        %1295 = vmatprep.subr.mxu0 0.0
        %1296 = vmatpush1.msra.mxu0 %v1285
        %1297 = vmatprep.subr.mxu0 0.0
        %1298 = vmatpush1.msra.mxu0 %v1284
        %1299 = vmatprep.subr.mxu0 0.0
        %1300 = vmatpush1.msra.mxu0 %v1283
        %1301 = vmatprep.subr.mxu0 0.0
        %1302 = vmatpush1.msra.mxu0 %v1282
        %1303 = vmatprep.subr.mxu0 0.0
        %1304 = vmatpush1.msra.mxu0 %v1281
        %1305 = vmatprep.subr.mxu0 0.0
        %1306 = vmatpush1.msra.mxu0 %v1280
        %1307 = vmatprep.subr.mxu0 0.0
        %1308 = vmatpush1.msra.mxu0 %v1279
        %1309 = vmatprep.subr.mxu0 0.0
        %1310 = vmatpush1.msra.mxu0 %v1278
        %1311 = vmatprep.subr.mxu0 0.0
        %1312 = vmatpush1.msra.mxu0 %v1277
        %1313 = vmatprep.subr.mxu0 0.0
        %1314 = vmatpush1.msra.mxu0 %v1276
        %1315 = vmatprep.subr.mxu0 0.0
        %1316 = vmatpush1.msra.mxu0 %v1275
        %1317 = vmatprep.subr.mxu0 0.0
        %1318 = vmatpush1.msra.mxu0 %v1274
        %1319 = vmatprep.subr.mxu0 0.0
        %1320 = vmatpush1.msra.mxu0 %v1273
        %1321 = vmatprep.subr.mxu0 0.0
        %1322 = vmatpush2.msra.mxu0 0.0
        %1323 = vmatprep.subr.mxu0 0.0
        %1324 = vmatpush2.msra.mxu0 0.0
        %1325 = vmatprep.subr.mxu0 0.0
        %1326 = vmatpush2.msra.mxu0 0.0
        %1327 = vmatprep.subr.mxu0 0.0
        %1328 = vmatpush2.msra.mxu0 0.0
        %1329 = vmatprep.subr.mxu0 0.0
        %1330 = vmatpush2.msra.mxu0 0.0
        %1331 = vmatprep.subr.mxu0 0.0
        %1332 = vmatpush2.msra.mxu0 0.0
        %1333 = vmatprep.subr.mxu0 0.0
        %1334 = vmatpush2.msra.mxu0 0.0
        %1335 = vmatprep.subr.mxu0 0.0
        %1336 = vmatpush2.msra.mxu0 0.0
        %1337 = vmatprep.subr.mxu0 0.0
        %1338 = vmatpush2.msra.mxu0 0.0
        %1339 = vmatprep.subr.mxu0 0.0
        %1340 = vmatpush2.msra.mxu0 0.0
        %1341 = vmatprep.subr.mxu0 0.0
        %1342 = vmatpush2.msra.mxu0 0.0
        %1343 = vmatprep.subr.mxu0 0.0
        %1344 = vmatpush2.msra.mxu0 0.0
        %1345 = vmatprep.subr.mxu0 0.0
        %1346 = vmatpush2.msra.mxu0 0.0
        %1347 = vmatprep.subr.mxu0 0.0
        %1348 = vmatpush2.msra.mxu0 0.0
        %1349 = vmatprep.subr.mxu0 0.0
        %1350 = vmatpush2.msra.mxu0 0.0
        %1351 = vmatprep.subr.mxu0 0.0
        %1352 = vmatpush2.msra.mxu0 0.0
        %1353 = vmatprep.mubr.f32.mxu0 0.0
        %1354 = vmatmul.mubr.f32.gmra.mxu0 %v233
        %v1355 = vpop.f32.mrf.mxu0
        %v1356 = vadd.f32 0.0, %v1355
        %v1357 = vpop.f32.mrf.mxu0
        %1358 = vmatprep.mubr.f32.mxu0 0.0
        %1359 = vmatmul.mubr.f32.gmra.mxu0 %v234
        %v1360 = vpop.f32.mrf.mxu0
        %v1361 = vadd.f32 0.0, %v1360
        %v1362 = vpop.f32.mrf.mxu0
        %1363 = vmatprep.mubr.f32.mxu0 0.0
        %1364 = vmatmul.mubr.f32.gmra.mxu0 %v235
        %v1365 = vpop.f32.mrf.mxu0
        %v1366 = vadd.f32 0.0, %v1365
        %v1367 = vpop.f32.mrf.mxu0
        %1368 = vmatprep.mubr.f32.mxu0 0.0
        %1369 = vmatmul.mubr.f32.gmra.mxu0 %v236
        %v1370 = vpop.f32.mrf.mxu0
        %v1371 = vadd.f32 0.0, %v1370
        %v1372 = vpop.f32.mrf.mxu0
        %1373 = vmatprep.mubr.f32.mxu0 0.0
        %1374 = vmatmul.mubr.f32.gmra.mxu0 %v237
        %v1375 = vpop.f32.mrf.mxu0
        %v1376 = vadd.f32 0.0, %v1375
        %v1377 = vpop.f32.mrf.mxu0
        %1378 = vmatprep.mubr.f32.mxu0 0.0
        %1379 = vmatmul.mubr.f32.gmra.mxu0 %v238
        %v1380 = vpop.f32.mrf.mxu0
        %v1381 = vadd.f32 0.0, %v1380
        %v1382 = vpop.f32.mrf.mxu0
        %1383 = vmatprep.mubr.f32.mxu0 0.0
        %1384 = vmatmul.mubr.f32.gmra.mxu0 %v239
        %v1385 = vpop.f32.mrf.mxu0
        %v1386 = vadd.f32 0.0, %v1385
        %v1387 = vpop.f32.mrf.mxu0
        %1388 = vmatprep.mubr.f32.mxu0 0.0
        %1389 = vmatmul.mubr.f32.gmra.mxu0 %v240
        %v1390 = vpop.f32.mrf.mxu0
        %v1391 = vadd.f32 0.0, %v1390
        %v1392 = vpop.f32.mrf.mxu0
        %1393 = vdwg.mxu0
        %v1394 = vadd.f32 %v1264, %v1356
        %v1395 = vadd.f32 %v1265, %v1361
        %v1396 = vadd.f32 %v1266, %v1366
        %v1397 = vadd.f32 %v1267, %v1371
        %v1398 = vadd.f32 %v1268, %v1376
        %v1399 = vadd.f32 %v1269, %v1381
        %v1400 = vadd.f32 %v1270, %v1386
        %v1401 = vadd.f32 %v1271, %v1391
        %v1402 = vld [vmem:[%s2] sm:$0x1]
        %v1404 = vlaneseq
        %v1405 = vshrl.u32 %v1404, 7
        %v1406 = vsub.s32 0, %v1405
        %v1407 = vrot.slane %v1402, %v1406
        %v1409 = vadd.f32 %v1394, %v1407
        %v1410 = vadd.f32 %v1395, %v1407
        %v1411 = vadd.f32 %v1396, %v1407
        %v1412 = vadd.f32 %v1397, %v1407
        %v1413 = vadd.f32 %v1398, %v1407
        %v1414 = vadd.f32 %v1399, %v1407
        %v1415 = vadd.f32 %v1400, %v1407
        %v1416 = vadd.f32 %v1401, %v1407
        %v1417 = vmax.f32 %v1409, 0.0
        %v1418 = vmax.f32 %v1410, 0.0
        %v1419 = vmax.f32 %v1411, 0.0
        %v1420 = vmax.f32 %v1412, 0.0
        %v1421 = vmax.f32 %v1413, 0.0
        %v1422 = vmax.f32 %v1414, 0.0
        %v1423 = vmax.f32 %v1415, 0.0
        %v1424 = vmax.f32 %v1416, 0.0
        %1425 = vst [vmem:[%s187] sm:$0xff] %v1417
        %1426 = vst [vmem:[%s187 + $0x8] sm:$0xff] %v1418
        %1427 = vst [vmem:[%s187 + $0x10] sm:$0xff] %v1419
        %1428 = vst [vmem:[%s187 + $0x18] sm:$0xff] %v1420
        %1429 = vst [vmem:[%s187 + $0x20] sm:$0xff] %v1421
        %1430 = vst [vmem:[%s187 + $0x28] sm:$0xff] %v1422
        %1431 = vst [vmem:[%s187 + $0x30] sm:$0xff] %v1423
        %1432 = vst [vmem:[%s187 + $0x38] sm:$0xff] %v1424
        %s1433 = sand.u32 %s109, 1
        %s1434 = scalar_lea.sflag [#allocation3], %s1433
        %s1435 = sand.u32 %s109, 1
        %s1436 = smul.addr %s1435, 64
        %s1437 = scalar_lea.vmem [#allocation2], %s1436
        // Predicated region
        $region33: #{tpu_custom_call.1} parent=31 // pred_check
          %p1438 = pneg %p119
        $region34: #{tpu_custom_call.1} parent=31 // pred_check_branch
          %1440 = sbr.rel (%p1438) target = $region36
        $region35: #{tpu_custom_call.1} parent=31 // pred_region
          %s1441 = smul.u32 8, %s22
          %s1443 = ssub.s32 1024, 1024
          %1444 = vsyncadd %s1434, %s1443
          %s1445 = smul.addr %s21, 8
          %s1446 = sadd.s32 %s1441, %s1445
          %s1447 = smul.addr %s1446, 128
          %s1448 = scalar_lea.hbm %s3, %s1447
          %s1449 = sshll.u32 %s1437, 4
          %s1450 = int_to_ptr.vmem [resolvable:$true] %s1449
          %1455 = dma.vmem_to_hbm [thread:$0]  %s1450, 1024, %s1448, %s1434, 128, 128, 8
        $region36: #{tpu_custom_call.1} parent=31 // pred_fallthru
          _
      $region32: #{tpu_custom_call.1} parent=5 // pred_fallthru
        _
      %p1456 = scmp.le.s32.totalorder 2, %s12
      // Predicated region
      $region37: #{tpu_custom_call.1} parent=5 // pred_check
        %p1457 = pneg %p1456
      $region38: #{tpu_custom_call.1} parent=5 // pred_check_branch
        %1459 = sbr.rel (%p1457) target = $region40
      $region39: #{tpu_custom_call.1} parent=5 // pred_region
        %s1460 = ssub.s32 %s12, 2
        // Predicated region
        $region41: #{tpu_custom_call.1} parent=39 // pred_check
          %p1461 = pneg %p125
        $region42: #{tpu_custom_call.1} parent=39 // pred_check_branch
          %1463 = sbr.rel (%p1461) target = $region44
        $region43: #{tpu_custom_call.1} parent=39 // pred_region
          %s1464 = sand.u32 %s110, 1
          %s1465 = scalar_lea.sflag [#allocation3], %s1464
          %s1466 = sand.u32 %s110, 1
          %s1467 = smul.addr %s1466, 64
          %s1468 = scalar_lea.vmem [#allocation2], %s1467
          %1469 = dma.done %s1465, 1024
        $region44: #{tpu_custom_call.1} parent=39 // pred_fallthru
          _
      $region40: #{tpu_custom_call.1} parent=5 // pred_fallthru
        _
    $region6: #{tpu_custom_call.1} parent=1 // loop_footer
      %s16 = sadd.s32 1, %s12
    $region7: #{tpu_custom_call.1} parent=1 // loop_footer_branch
      %11 = sbr.rel target = $region3
    $region8: #{tpu_custom_call.1} parent=1 // loop_exit
      _
    %1470 = vsyncpa [#allocation3], 1
    %s1471 = scalar_lea.sflag [#allocation3], 1
    %1472 = vsyncpa %s1471, 1

</llo_original>
